<compile_context>
chip_gen: v7x
topology: tpu7x:2x2x1
jax: 0.10.0
libtpu: 0.0.40
codegen_flags: <defaults>
</compile_context>

<pallas_src>
import functools

import jax
import jax.numpy as jnp
from jax.experimental import pallas as pl
from jax.experimental.pallas import tpu as pltpu


# ----------------------------------------------------------------------------
# Kernel: one batch tile of the whole forward pass
# ----------------------------------------------------------------------------
def logic_combine_kernel(x_ref, w1_ref, w2_ref, own_ref, owr_ref, ow2_ref,
                         b_ref, out_ref, *, ce, hdim, odim):
    """
    x_ref   : (TB, F)        concat(node, tri, trin, sq, sqn)
    w1_ref  : (F, hdim)      block-diagonal packing of c1w1..c4w1 (node rows zero)
    w2_ref  : (hdim, hdim)   block-diagonal packing of c1w2..c4w2
    own_ref : (ce, odim)     o1w1 rows for node, zero-padded to odim lanes
    owr_ref : (hdim, odim)   o1w1 rows for (t,tn,s,sn), zero-padded to odim lanes
    ow2_ref : (odim, odim)   o1w2 zero-padded (rows >= ce, cols >= out_size are 0)
    b_ref   : (4, max(hdim, odim))  packed biases [b1 | b2 | o1b1 | o1b2]
    out_ref : (TB, odim)     sigmoid output (cols >= out_size hold sigmoid(0)=0.5)
    """
    x = x_ref[...]
    b = b_ref[...]
    node = x[:, :ce]

    # Branch MLPs, layer 1: four (.,*)->32 matmuls fused into one 128-wide matmul.
    h1 = jnp.dot(x, w1_ref[...], preferred_element_type=jnp.float32) + b[0:1, :hdim]
    h1 = jnp.maximum(h1, 0.0)
    # Branch MLPs, layer 2 (block-diagonal 128x128).  h2 == concat(t, tn, s, sn).
    h2 = jnp.dot(h1, w2_ref[...], preferred_element_type=jnp.float32) + b[1:2, :hdim]

    # _Fout1 layer 1: concat(node, h2) @ o1w1 expressed as two split dots.
    h3 = (jnp.dot(node, own_ref[...], preferred_element_type=jnp.float32)
          + jnp.dot(h2, owr_ref[...], preferred_element_type=jnp.float32)
          + b[2:3, :odim])
    h3 = jnp.maximum(h3, 0.0)
    # _Fout1 layer 2 + sigmoid, lane-dense (odim = 128) store.
    y = jnp.dot(h3, ow2_ref[...], preferred_element_type=jnp.float32) + b[3:4, :odim]
    out_ref[...] = jax.nn.sigmoid(y).astype(out_ref.dtype)


# ----------------------------------------------------------------------------
# Parameter init (deterministic, PyTorch-Linear-like scale)
# ----------------------------------------------------------------------------
def linear_params(key, fan_in, fan_out):
    kw, kb = jax.random.split(key)
    bound = 1.0 / (fan_in ** 0.5)
    w = jax.random.uniform(kw, (fan_in, fan_out), jnp.float32, -bound, bound)
    b = jax.random.uniform(kb, (1, fan_out), jnp.float32, -bound, bound)
    return w, b


def init_params(key, trianglelogic_num, squarelogic_num, combine_embed, in_size, out_size):
    keys = jax.random.split(key, 10)
    p = {}
    p["c1w1"], p["c1b1"] = linear_params(keys[0], in_size * trianglelogic_num * 2, combine_embed)
    p["c1w2"], p["c1b2"] = linear_params(keys[1], combine_embed, combine_embed)
    p["c2w1"], p["c2b1"] = linear_params(keys[2], in_size * trianglelogic_num, combine_embed)
    p["c2w2"], p["c2b2"] = linear_params(keys[3], combine_embed, combine_embed)
    p["c3w1"], p["c3b1"] = linear_params(keys[4], in_size * squarelogic_num * 2, combine_embed)
    p["c3w2"], p["c3b2"] = linear_params(keys[5], combine_embed, combine_embed)
    p["c4w1"], p["c4b1"] = linear_params(keys[6], in_size * squarelogic_num, combine_embed)
    p["c4w2"], p["c4b2"] = linear_params(keys[7], combine_embed, combine_embed)
    p["o1w1"], p["o1b1"] = linear_params(keys[8], combine_embed * 5, combine_embed)
    p["o1w2"], p["o1b2"] = linear_params(keys[9], combine_embed, out_size)
    return p


# ----------------------------------------------------------------------------
# Pack raw params into the fused / lane-dense layout used by the kernel
# ----------------------------------------------------------------------------
def pack_params(p, *, in_size, trianglelogic_num, squarelogic_num, combine_embed, out_size):
    ce = combine_embed
    d_node = ce
    d_tri = in_size * trianglelogic_num * 2
    d_trin = in_size * trianglelogic_num
    d_sq = in_size * squarelogic_num * 2
    d_sqn = in_size * squarelogic_num
    feat = d_node + d_tri + d_trin + d_sq + d_sqn
    hdim = 4 * ce                      # fused branch hidden width
    odim = 128                         # lane-dense width for _Fout1 hidden / output
    assert ce <= odim and out_size <= odim
    bw = max(hdim, odim)

    # Stage-1 block diagonal: rows index x_all features, node rows stay zero.
    w1 = jnp.zeros((feat, hdim), jnp.float32)
    r = d_node
    w1 = w1.at[r:r + d_tri, 0 * ce:1 * ce].set(p["c1w1"]);  r += d_tri
    w1 = w1.at[r:r + d_trin, 1 * ce:2 * ce].set(p["c2w1"]); r += d_trin
    w1 = w1.at[r:r + d_sq, 2 * ce:3 * ce].set(p["c3w1"]);   r += d_sq
    w1 = w1.at[r:r + d_sqn, 3 * ce:4 * ce].set(p["c4w1"])

    # Stage-2 block diagonal (hdim x hdim).
    w2 = jnp.zeros((hdim, hdim), jnp.float32)
    for k, name in enumerate(["c1w2", "c2w2", "c3w2", "c4w2"]):
        w2 = w2.at[k * ce:(k + 1) * ce, k * ce:(k + 1) * ce].set(p[name])

    # _Fout1 layer 1, split into node rows and branch rows; pad out-lanes to odim.
    ow_node = jnp.zeros((ce, odim), jnp.float32).at[:, :ce].set(p["o1w1"][:ce, :])
    ow_rest = jnp.zeros((hdim, odim), jnp.float32).at[:, :ce].set(p["o1w1"][ce:, :])
    # _Fout1 layer 2, padded to (odim, odim).
    ow2 = jnp.zeros((odim, odim), jnp.float32).at[:ce, :out_size].set(p["o1w2"])

    biases = jnp.zeros((4, bw), jnp.float32)
    biases = biases.at[0, :hdim].set(
        jnp.concatenate([p["c1b1"], p["c2b1"], p["c3b1"], p["c4b1"]], axis=1)[0])
    biases = biases.at[1, :hdim].set(
        jnp.concatenate([p["c1b2"], p["c2b2"], p["c3b2"], p["c4b2"]], axis=1)[0])
    biases = biases.at[2, :ce].set(p["o1b1"][0])
    biases = biases.at[3, :out_size].set(p["o1b2"][0])

    return dict(w1=w1, w2=w2, ow_node=ow_node, ow_rest=ow_rest, ow2=ow2,
                biases=biases, feat=feat, hdim=hdim, odim=odim)


# ----------------------------------------------------------------------------
# Forward wrapper
# ----------------------------------------------------------------------------
def logic_combine_forward(params, node_embed, triangle_embed, triangleneighbor_embed,
                          square_embed, squareneighbor_embed, *,
                          in_size, trianglelogic_num, squarelogic_num,
                          combine_embed, out_size, batch_tile=128):
    B = node_embed.shape[0]
    ce = combine_embed

    # Glue: flatten (B, L, in_size) -> (B, L*in_size) and fold everything into one slab.
    x_all = jnp.concatenate(
        [node_embed.astype(jnp.float32),
         triangle_embed.reshape(B, -1).astype(jnp.float32),
         triangleneighbor_embed.reshape(B, -1).astype(jnp.float32),
         square_embed.reshape(B, -1).astype(jnp.float32),
         squareneighbor_embed.reshape(B, -1).astype(jnp.float32)], axis=1)

    packed = pack_params(params, in_size=in_size, trianglelogic_num=trianglelogic_num,
                         squarelogic_num=squarelogic_num, combine_embed=combine_embed,
                         out_size=out_size)
    feat, hdim, odim = packed["feat"], packed["hdim"], packed["odim"]
    assert x_all.shape[1] == feat

    tb = min(batch_tile, max(8, B))
    n_tiles = pl.cdiv(B, tb)
    Bp = n_tiles * tb
    if Bp != B:
        x_all = jnp.pad(x_all, ((0, Bp - B), (0, 0)))

    # Batch-tiled activations; weights resident across the whole grid.
    x_spec = pl.BlockSpec((tb, feat), lambda i: (i, 0))
    w1_spec = pl.BlockSpec(packed["w1"].shape, lambda i: (0, 0))
    w2_spec = pl.BlockSpec(packed["w2"].shape, lambda i: (0, 0))
    own_spec = pl.BlockSpec(packed["ow_node"].shape, lambda i: (0, 0))
    owr_spec = pl.BlockSpec(packed["ow_rest"].shape, lambda i: (0, 0))
    ow2_spec = pl.BlockSpec(packed["ow2"].shape, lambda i: (0, 0))
    b_spec = pl.BlockSpec(packed["biases"].shape, lambda i: (0, 0))
    out_spec = pl.BlockSpec((tb, odim), lambda i: (i, 0))

    weight_bytes = 4 * sum(packed[k].size for k in
                           ("w1", "w2", "ow_node", "ow_rest", "ow2", "biases"))
    flops = 2 * Bp * (feat * hdim + hdim * hdim + ce * odim + hdim * odim + odim * odim)
    cost = pl.CostEstimate(
        flops=flops,
        transcendentals=Bp * odim,                       # sigmoid
        bytes_accessed=4 * (Bp * feat + Bp * odim) + weight_bytes,
    )

    kernel = functools.partial(logic_combine_kernel, ce=ce, hdim=hdim, odim=odim)
    out_padded = pl.pallas_call(
        kernel,
        out_shape=jax.ShapeDtypeStruct((Bp, odim), jnp.float32),
        grid_spec=pltpu.PrefetchScalarGridSpec(
            num_scalar_prefetch=0,
            grid=(n_tiles,),
            in_specs=[x_spec, w1_spec, w2_spec, own_spec, owr_spec, ow2_spec, b_spec],
            out_specs=out_spec,
        ),
        compiler_params=pltpu.CompilerParams(dimension_semantics=("parallel",)),
        cost_estimate=cost,
    )(x_all, packed["w1"], packed["w2"], packed["ow_node"], packed["ow_rest"],
      packed["ow2"], packed["biases"])

    # Drop batch padding and output-lane padding (free layout plumbing).
    return out_padded[:B, :out_size]


# ----------------------------------------------------------------------------
# Pure-JAX reference matching the PyTorch forward (triangle+square, concat)
# ----------------------------------------------------------------------------
def _mlp2(x, w1, b1, w2, b2):
    h = jnp.maximum(jnp.dot(x, w1) + b1, 0.0)
    return jnp.dot(h, w2) + b2


def reference_forward(params, node_embed, tri3, trin3, sq3, sqn3):
    B = node_embed.shape[0]
    tri = tri3.reshape(B, -1)
    trin = trin3.reshape(B, -1)
    sq = sq3.reshape(B, -1)
    sqn = sqn3.reshape(B, -1)
    t = _mlp2(tri, params["c1w1"], params["c1b1"], params["c1w2"], params["c1b2"])
    tn = _mlp2(trin, params["c2w1"], params["c2b1"], params["c2w2"], params["c2b2"])
    s = _mlp2(sq, params["c3w1"], params["c3b1"], params["c3w2"], params["c3b2"])
    sn = _mlp2(sqn, params["c4w1"], params["c4b1"], params["c4w2"], params["c4b2"])
    e = jnp.concatenate((node_embed, t, tn, s, sn), axis=1)
    y = _mlp2(e, params["o1w1"], params["o1b1"], params["o1w2"], params["o1b2"])
    return jax.nn.sigmoid(y)


if __name__ == "__main__":
    # Small, forward-consistent shapes (B exercises the batch grid: 2 tiles of 128).
    B = 256
    in_size = 16
    trianglelogic_num = 3
    squarelogic_num = 4
    combine_embed = 32
    out_size = 16

    key = jax.random.PRNGKey(0)
    kp, k0, k1, k2, k3, k4 = jax.random.split(key, 6)

    params = init_params(kp, trianglelogic_num, squarelogic_num,
                         combine_embed, in_size, out_size)

    node_embed = jax.random.normal(k0, (B, combine_embed), jnp.float32)
    triangle_embed = jax.random.normal(k1, (B, trianglelogic_num * 2, in_size), jnp.float32)
    triangleneighbor_embed = jax.random.normal(k2, (B, trianglelogic_num, in_size), jnp.float32)
    square_embed = jax.random.normal(k3, (B, squarelogic_num * 2, in_size), jnp.float32)
    squareneighbor_embed = jax.random.normal(k4, (B, squarelogic_num, in_size), jnp.float32)

    out = logic_combine_forward(
        params, node_embed, triangle_embed, triangleneighbor_embed,
        square_embed, squareneighbor_embed,
        in_size=in_size, trianglelogic_num=trianglelogic_num,
        squarelogic_num=squarelogic_num, combine_embed=combine_embed,
        out_size=out_size, batch_tile=128,
    )
    out = jax.block_until_ready(out)

    ref = reference_forward(params, node_embed, triangle_embed,
                            triangleneighbor_embed, square_embed,
                            squareneighbor_embed)
    assert out.shape == (B, out_size)
    assert jnp.allclose(out, ref, atol=1e-4, rtol=1e-4), "mismatch vs reference"
    print("KERNEL_OK")
</pallas_src>

<mosaic_0001>
module attributes {stable_mosaic.version = 11 : i64} {
  func.func @logic_combine_kernel(%arg0: i32, %arg1: memref<128x368xf32, #tpu.memory_space<vmem>>, %arg2: memref<368x128xf32, #tpu.memory_space<vmem>>, %arg3: memref<128x128xf32, #tpu.memory_space<vmem>>, %arg4: memref<32x128xf32, #tpu.memory_space<vmem>>, %arg5: memref<128x128xf32, #tpu.memory_space<vmem>>, %arg6: memref<128x128xf32, #tpu.memory_space<vmem>>, %arg7: memref<4x128xf32, #tpu.memory_space<vmem>>, %arg8: memref<128x128xf32, #tpu.memory_space<vmem>>) attributes {dimension_semantics = [#tpu.dimension_semantics<parallel>], iteration_bounds = array<i64: 2>, scalar_prefetch = 0 : i64, scratch_operands = 0 : i64, tpu.core_type = #tpu.core_type<tc>, window_params = [{transform_indices = @transform_0, window_bounds = array<i64: 128, 368>}, {pipeline_mode = #tpu.pipeline_mode<synchronous>, transform_indices = @transform_1, window_bounds = array<i64: 368, 128>}, {pipeline_mode = #tpu.pipeline_mode<synchronous>, transform_indices = @transform_2, window_bounds = array<i64: 128, 128>}, {pipeline_mode = #tpu.pipeline_mode<synchronous>, transform_indices = @transform_3, window_bounds = array<i64: 32, 128>}, {pipeline_mode = #tpu.pipeline_mode<synchronous>, transform_indices = @transform_4, window_bounds = array<i64: 128, 128>}, {pipeline_mode = #tpu.pipeline_mode<synchronous>, transform_indices = @transform_5, window_bounds = array<i64: 128, 128>}, {pipeline_mode = #tpu.pipeline_mode<synchronous>, transform_indices = @transform_6, window_bounds = array<i64: 4, 128>}, {transform_indices = @transform_7, window_bounds = array<i64: 128, 128>}]} {
    %c0 = arith.constant 0 : index
    %c0_0 = arith.constant 0 : index
    %0 = vector.load %arg1[%c0, %c0_0] : memref<128x368xf32, #tpu.memory_space<vmem>>, vector<128x368xf32>
    %c0_1 = arith.constant 0 : index
    %c0_2 = arith.constant 0 : index
    %1 = vector.load %arg7[%c0_1, %c0_2] : memref<4x128xf32, #tpu.memory_space<vmem>>, vector<4x128xf32>
    %2 = vector.extract_strided_slice %0 {offsets = [0, 0], sizes = [128, 32], strides = [1, 1]} : vector<128x368xf32> to vector<128x32xf32>
    %c0_3 = arith.constant 0 : index
    %c0_4 = arith.constant 0 : index
    %3 = vector.load %arg2[%c0_3, %c0_4] : memref<368x128xf32, #tpu.memory_space<vmem>>, vector<368x128xf32>
    %cst = arith.constant dense<0.000000e+00> : vector<128x128xf32>
    %4 = tpu.matmul %0, %3, %cst {dimension_numbers = #tpu.dot_dimension_numbers<[1], [0], [0], [1], [0, 0, 1, 1], [], []>} : vector<128x368xf32>, vector<368x128xf32>, vector<128x128xf32> -> vector<128x128xf32>
    %5 = vector.extract_strided_slice %1 {offsets = [0, 0], sizes = [1, 128], strides = [1, 1]} : vector<4x128xf32> to vector<1x128xf32>
    %6 = vector.broadcast %5 : vector<1x128xf32> to vector<128x128xf32>
    %7 = arith.addf %4, %6 : vector<128x128xf32>
    %cst_5 = arith.constant 0.000000e+00 : f32
    %8 = vector.broadcast %cst_5 : f32 to vector<128x128xf32>
    %9 = arith.maximumf %7, %8 : vector<128x128xf32>
    %c0_6 = arith.constant 0 : index
    %c0_7 = arith.constant 0 : index
    %10 = vector.load %arg3[%c0_6, %c0_7] : memref<128x128xf32, #tpu.memory_space<vmem>>, vector<128x128xf32>
    %cst_8 = arith.constant dense<0.000000e+00> : vector<128x128xf32>
    %11 = tpu.matmul %9, %10, %cst_8 {dimension_numbers = #tpu.dot_dimension_numbers<[1], [0], [0], [1], [0, 0, 1, 1], [], []>} : vector<128x128xf32>, vector<128x128xf32>, vector<128x128xf32> -> vector<128x128xf32>
    %12 = vector.extract_strided_slice %1 {offsets = [1, 0], sizes = [1, 128], strides = [1, 1]} : vector<4x128xf32> to vector<1x128xf32>
    %13 = vector.broadcast %12 : vector<1x128xf32> to vector<128x128xf32>
    %14 = arith.addf %11, %13 : vector<128x128xf32>
    %c0_9 = arith.constant 0 : index
    %c0_10 = arith.constant 0 : index
    %15 = vector.load %arg4[%c0_9, %c0_10] : memref<32x128xf32, #tpu.memory_space<vmem>>, vector<32x128xf32>
    %cst_11 = arith.constant dense<0.000000e+00> : vector<128x128xf32>
    %16 = tpu.matmul %2, %15, %cst_11 {dimension_numbers = #tpu.dot_dimension_numbers<[1], [0], [0], [1], [0, 0, 1, 1], [], []>} : vector<128x32xf32>, vector<32x128xf32>, vector<128x128xf32> -> vector<128x128xf32>
    %c0_12 = arith.constant 0 : index
    %c0_13 = arith.constant 0 : index
    %17 = vector.load %arg5[%c0_12, %c0_13] : memref<128x128xf32, #tpu.memory_space<vmem>>, vector<128x128xf32>
    %cst_14 = arith.constant dense<0.000000e+00> : vector<128x128xf32>
    %18 = tpu.matmul %14, %17, %cst_14 {dimension_numbers = #tpu.dot_dimension_numbers<[1], [0], [0], [1], [0, 0, 1, 1], [], []>} : vector<128x128xf32>, vector<128x128xf32>, vector<128x128xf32> -> vector<128x128xf32>
    %19 = arith.addf %16, %18 : vector<128x128xf32>
    %20 = vector.extract_strided_slice %1 {offsets = [2, 0], sizes = [1, 128], strides = [1, 1]} : vector<4x128xf32> to vector<1x128xf32>
    %21 = vector.broadcast %20 : vector<1x128xf32> to vector<128x128xf32>
    %22 = arith.addf %19, %21 : vector<128x128xf32>
    %cst_15 = arith.constant 0.000000e+00 : f32
    %23 = vector.broadcast %cst_15 : f32 to vector<128x128xf32>
    %24 = arith.maximumf %22, %23 : vector<128x128xf32>
    %c0_16 = arith.constant 0 : index
    %c0_17 = arith.constant 0 : index
    %25 = vector.load %arg6[%c0_16, %c0_17] : memref<128x128xf32, #tpu.memory_space<vmem>>, vector<128x128xf32>
    %cst_18 = arith.constant dense<0.000000e+00> : vector<128x128xf32>
    %26 = tpu.matmul %24, %25, %cst_18 {dimension_numbers = #tpu.dot_dimension_numbers<[1], [0], [0], [1], [0, 0, 1, 1], [], []>} : vector<128x128xf32>, vector<128x128xf32>, vector<128x128xf32> -> vector<128x128xf32>
    %27 = vector.extract_strided_slice %1 {offsets = [3, 0], sizes = [1, 128], strides = [1, 1]} : vector<4x128xf32> to vector<1x128xf32>
    %28 = vector.broadcast %27 : vector<1x128xf32> to vector<128x128xf32>
    %29 = arith.addf %26, %28 : vector<128x128xf32>
    %30 = arith.negf %29 : vector<128x128xf32>
    %31 = math.exp %30 : vector<128x128xf32>
    %cst_19 = arith.constant 1.000000e+00 : f32
    %32 = vector.broadcast %cst_19 : f32 to vector<128x128xf32>
    %33 = arith.addf %32, %31 : vector<128x128xf32>
    %34 = arith.divf %32, %33 : vector<128x128xf32>
    %c0_20 = arith.constant 0 : index
    %c0_21 = arith.constant 0 : index
    %35 = vector.load %arg8[%c0_20, %c0_21] : memref<128x128xf32, #tpu.memory_space<vmem>>, vector<128x128xf32>
    tpu.vector_store %arg8[%c0_20, %c0_21], %34 {strides = array<i32>} : memref<128x128xf32, #tpu.memory_space<vmem>>, vector<128x128xf32>,
    return
  }
  func.func @transform_0(%arg0: i32) -> (i32, i32) {
    %c0_i32 = arith.constant 0 : i32
    %c0_i32_0 = arith.constant 0 : i32
    return %arg0, %c0_i32 : i32, i32
  }
  func.func @transform_1(%arg0: i32) -> (i32, i32) {
    %c0_i32 = arith.constant 0 : i32
    %c0_i32_0 = arith.constant 0 : i32
    %c0_i32_1 = arith.constant 0 : i32
    return %c0_i32, %c0_i32_0 : i32, i32
  }
  func.func @transform_2(%arg0: i32) -> (i32, i32) {
    %c0_i32 = arith.constant 0 : i32
    %c0_i32_0 = arith.constant 0 : i32
    %c0_i32_1 = arith.constant 0 : i32
    return %c0_i32, %c0_i32_0 : i32, i32
  }
  func.func @transform_3(%arg0: i32) -> (i32, i32) {
    %c0_i32 = arith.constant 0 : i32
    %c0_i32_0 = arith.constant 0 : i32
    %c0_i32_1 = arith.constant 0 : i32
    return %c0_i32, %c0_i32_0 : i32, i32
  }
  func.func @transform_4(%arg0: i32) -> (i32, i32) {
    %c0_i32 = arith.constant 0 : i32
    %c0_i32_0 = arith.constant 0 : i32
    %c0_i32_1 = arith.constant 0 : i32
    return %c0_i32, %c0_i32_0 : i32, i32
  }
  func.func @transform_5(%arg0: i32) -> (i32, i32) {
    %c0_i32 = arith.constant 0 : i32
    %c0_i32_0 = arith.constant 0 : i32
    %c0_i32_1 = arith.constant 0 : i32
    return %c0_i32, %c0_i32_0 : i32, i32
  }
  func.func @transform_6(%arg0: i32) -> (i32, i32) {
    %c0_i32 = arith.constant 0 : i32
    %c0_i32_0 = arith.constant 0 : i32
    %c0_i32_1 = arith.constant 0 : i32
    return %c0_i32, %c0_i32_0 : i32, i32
  }
  func.func @transform_7(%arg0: i32) -> (i32, i32) {
    %c0_i32 = arith.constant 0 : i32
    %c0_i32_0 = arith.constant 0 : i32
    return %arg0, %c0_i32 : i32, i32
  }
}

</mosaic_0001>

<llo_original>
// kernel: tpu_custom_call.1
$region0: #{tpu_custom_call.1}
  #allocation0 [shape = 'u32[]', space=smem, size = 0x4, offset = 0x4, fixed_abs, tag = 'smem constant byte address 0x4 - core index']
  #allocation1 [shape = 'u32[144,128]{1,0:T(1,128)}', space=vmem, size = 0x12000, scoped, tag = 'internal scratch']
  %s0 = inlined_call_operand.vmem [shape: f32[256,368], index: 0, kind: input, shape index: {}]
  %s1 = inlined_call_operand.vmem [shape: f32[368,128], index: 1, kind: input, shape index: {}]
  %s2 = inlined_call_operand.vmem [shape: f32[128,128], index: 2, kind: input, shape index: {}]
  %s3 = inlined_call_operand.vmem [shape: f32[32,128], index: 3, kind: input, shape index: {}]
  %s4 = inlined_call_operand.vmem [shape: f32[128,128], index: 4, kind: input, shape index: {}]
  %s5 = inlined_call_operand.vmem [shape: f32[128,128], index: 5, kind: input, shape index: {}]
  %s6 = inlined_call_operand.vmem [shape: f32[4,128], index: 6, kind: input, shape index: {}]
  %s7 = inlined_call_operand.hbm [shape: f32[256,128], index: 7, kind: output, shape index: {}]
  %s8 = sld [smem:[#allocation0]]
  $region61: #{tpu_custom_call.1} parent=0
    _
  %s10 = ssub.s32 1, %s8
  %s11 = scalar_select 0, %s10, %s8
  $region1: #{tpu_custom_call.1} parent=0
    #allocation2 [shape = 'u8[131072]{0}', space=vmem, size = 0x20000, scoped, tag = 'output window, operand 0']
    #allocation3 [shape = 's32[2]{0}', space=sflag, size = 0x8, scoped, tag = 'scoped memory for tpu_custom_call.1']
    %12 = vsyncpa [#allocation3], 0
    %s13 = scalar_lea.sflag [#allocation3], 1
    %14 = vsyncpa %s13, 0
    loop: start=0, step=1, limit=4
    $region2: #{tpu_custom_call.1} parent=1 // loop_pre_header
      _
    $region3: #{tpu_custom_call.1} parent=1 // loop_header
      %s16 = sphi 0, %s20
      %p17 = scmp.ge.s32.totalorder %s16, 4
      %s26 = sphi 0, %s28
      %s29 = sphi 0, %s26
      %s30 = sphi 0, %s29
      %s46 = sphi 0, %s30
      %s50 = sphi 0, %s50
      %s52 = sphi 0, %s50
      %s53 = sphi 0, %s52
      %s67 = sphi 0, %s53
      %s71 = sphi 0, %s71
      %s73 = sphi 0, %s71
      %s74 = sphi 0, %s73
      %s88 = sphi 0, %s74
      %s92 = sphi 0, %s92
      %s94 = sphi 0, %s92
      %s95 = sphi 0, %s94
      %s109 = sphi 0, %s95
      %s113 = sphi 0, %s113
      %s115 = sphi 0, %s113
      %s116 = sphi 0, %s115
      %s130 = sphi 0, %s116
      %s134 = sphi 0, %s134
      %s136 = sphi 0, %s134
      %s137 = sphi 0, %s136
      %s151 = sphi 0, %s137
      %s155 = sphi 0, %s155
      %s157 = sphi 0, %s155
      %s158 = sphi 0, %s157
      %s172 = sphi 0, %s158
      %s178 = sphi 0, %s180
      %s181 = sphi 0, %s178
      %s182 = sphi 0, %s181
      %s198 = sphi 0, %s182
    $region4: #{tpu_custom_call.1} parent=1 // loop_header_branch
      %19 = sbr.rel (%p17) target = $region8
    $region5: #{tpu_custom_call.1} parent=1 // loop_body
      %s21 = ssub.s32 %s16, 1
      %s22 = ssub.s32 %s16, 2
      %s23 = sadd.s32 %s16, 1
      %s24 = ssub.s32 %s16, %s23
      %p25 = scmp.eq.s32.totalorder %s24, 0
      %s27 = sadd.s32 %s26, 1
      %s28 = scalar_select %p25, %s26, %s27
      %p31 = pneg %p25
      %p32 = scmp.eq.s32.totalorder %s16, 1
      %p33 = por %p31, %p32
      %p34 = scmp.ne.s32.totalorder %s26, %s29
      %p35 = scmp.eq.s32.totalorder %s16, 0
      %p36 = por %p34, %p35
      %p37 = scmp.ne.s32.totalorder %s26, %s29
      %p38 = scmp.eq.s32.totalorder %s21, 1
      %p39 = por %p37, %p38
      %p40 = scmp.ne.s32.totalorder %s29, %s30
      %p41 = scmp.eq.s32.totalorder %s21, 0
      %p42 = por %p40, %p41
      %p43 = scmp.ne.s32.totalorder %s29, %s30
      %p44 = scmp.eq.s32.totalorder %s22, 1
      %p45 = por %p43, %p44
      %p47 = scmp.ne.s32.totalorder %s30, %s46
      %p48 = scmp.eq.s32.totalorder %s22, 0
      %p49 = por %p47, %p48
      %s51 = sadd.s32 %s50, 1
      %p54 = scmp.eq.s32.totalorder %s16, 1
      %p55 = scmp.ne.s32.totalorder %s50, %s52
      %p56 = scmp.eq.s32.totalorder %s16, 0
      %p57 = por %p55, %p56
      %p58 = scmp.ne.s32.totalorder %s50, %s52
      %p59 = scmp.eq.s32.totalorder %s21, 1
      %p60 = por %p58, %p59
      %p61 = scmp.ne.s32.totalorder %s52, %s53
      %p62 = scmp.eq.s32.totalorder %s21, 0
      %p63 = por %p61, %p62
      %p64 = scmp.ne.s32.totalorder %s52, %s53
      %p65 = scmp.eq.s32.totalorder %s22, 1
      %p66 = por %p64, %p65
      %p68 = scmp.ne.s32.totalorder %s53, %s67
      %p69 = scmp.eq.s32.totalorder %s22, 0
      %p70 = por %p68, %p69
      %s72 = sadd.s32 %s71, 1
      %p75 = scmp.eq.s32.totalorder %s16, 1
      %p76 = scmp.ne.s32.totalorder %s71, %s73
      %p77 = scmp.eq.s32.totalorder %s16, 0
      %p78 = por %p76, %p77
      %p79 = scmp.ne.s32.totalorder %s71, %s73
      %p80 = scmp.eq.s32.totalorder %s21, 1
      %p81 = por %p79, %p80
      %p82 = scmp.ne.s32.totalorder %s73, %s74
      %p83 = scmp.eq.s32.totalorder %s21, 0
      %p84 = por %p82, %p83
      %p85 = scmp.ne.s32.totalorder %s73, %s74
      %p86 = scmp.eq.s32.totalorder %s22, 1
      %p87 = por %p85, %p86
      %p89 = scmp.ne.s32.totalorder %s74, %s88
      %p90 = scmp.eq.s32.totalorder %s22, 0
      %p91 = por %p89, %p90
      %s93 = sadd.s32 %s92, 1
      %p96 = scmp.eq.s32.totalorder %s16, 1
      %p97 = scmp.ne.s32.totalorder %s92, %s94
      %p98 = scmp.eq.s32.totalorder %s16, 0
      %p99 = por %p97, %p98
      %p100 = scmp.ne.s32.totalorder %s92, %s94
      %p101 = scmp.eq.s32.totalorder %s21, 1
      %p102 = por %p100, %p101
      %p103 = scmp.ne.s32.totalorder %s94, %s95
      %p104 = scmp.eq.s32.totalorder %s21, 0
      %p105 = por %p103, %p104
      %p106 = scmp.ne.s32.totalorder %s94, %s95
      %p107 = scmp.eq.s32.totalorder %s22, 1
      %p108 = por %p106, %p107
      %p110 = scmp.ne.s32.totalorder %s95, %s109
      %p111 = scmp.eq.s32.totalorder %s22, 0
      %p112 = por %p110, %p111
      %s114 = sadd.s32 %s113, 1
      %p117 = scmp.eq.s32.totalorder %s16, 1
      %p118 = scmp.ne.s32.totalorder %s113, %s115
      %p119 = scmp.eq.s32.totalorder %s16, 0
      %p120 = por %p118, %p119
      %p121 = scmp.ne.s32.totalorder %s113, %s115
      %p122 = scmp.eq.s32.totalorder %s21, 1
      %p123 = por %p121, %p122
      %p124 = scmp.ne.s32.totalorder %s115, %s116
      %p125 = scmp.eq.s32.totalorder %s21, 0
      %p126 = por %p124, %p125
      %p127 = scmp.ne.s32.totalorder %s115, %s116
      %p128 = scmp.eq.s32.totalorder %s22, 1
      %p129 = por %p127, %p128
      %p131 = scmp.ne.s32.totalorder %s116, %s130
      %p132 = scmp.eq.s32.totalorder %s22, 0
      %p133 = por %p131, %p132
      %s135 = sadd.s32 %s134, 1
      %p138 = scmp.eq.s32.totalorder %s16, 1
      %p139 = scmp.ne.s32.totalorder %s134, %s136
      %p140 = scmp.eq.s32.totalorder %s16, 0
      %p141 = por %p139, %p140
      %p142 = scmp.ne.s32.totalorder %s134, %s136
      %p143 = scmp.eq.s32.totalorder %s21, 1
      %p144 = por %p142, %p143
      %p145 = scmp.ne.s32.totalorder %s136, %s137
      %p146 = scmp.eq.s32.totalorder %s21, 0
      %p147 = por %p145, %p146
      %p148 = scmp.ne.s32.totalorder %s136, %s137
      %p149 = scmp.eq.s32.totalorder %s22, 1
      %p150 = por %p148, %p149
      %p152 = scmp.ne.s32.totalorder %s137, %s151
      %p153 = scmp.eq.s32.totalorder %s22, 0
      %p154 = por %p152, %p153
      %s156 = sadd.s32 %s155, 1
      %p159 = scmp.eq.s32.totalorder %s16, 1
      %p160 = scmp.ne.s32.totalorder %s155, %s157
      %p161 = scmp.eq.s32.totalorder %s16, 0
      %p162 = por %p160, %p161
      %p163 = scmp.ne.s32.totalorder %s155, %s157
      %p164 = scmp.eq.s32.totalorder %s21, 1
      %p165 = por %p163, %p164
      %p166 = scmp.ne.s32.totalorder %s157, %s158
      %p167 = scmp.eq.s32.totalorder %s21, 0
      %p168 = por %p166, %p167
      %p169 = scmp.ne.s32.totalorder %s157, %s158
      %p170 = scmp.eq.s32.totalorder %s22, 1
      %p171 = por %p169, %p170
      %p173 = scmp.ne.s32.totalorder %s158, %s172
      %p174 = scmp.eq.s32.totalorder %s22, 0
      %p175 = por %p173, %p174
      %s176 = ssub.s32 %s16, %s23
      %p177 = scmp.eq.s32.totalorder %s176, 0
      %s179 = sadd.s32 %s178, 1
      %s180 = scalar_select %p177, %s178, %s179
      %p183 = pneg %p177
      %p184 = scmp.eq.s32.totalorder %s16, 1
      %p185 = por %p183, %p184
      %p186 = scmp.ne.s32.totalorder %s178, %s181
      %p187 = scmp.eq.s32.totalorder %s16, 0
      %p188 = por %p186, %p187
      %p189 = scmp.ne.s32.totalorder %s178, %s181
      %p190 = scmp.eq.s32.totalorder %s21, 1
      %p191 = por %p189, %p190
      %p192 = scmp.ne.s32.totalorder %s181, %s182
      %p193 = scmp.eq.s32.totalorder %s21, 0
      %p194 = por %p192, %p193
      %p195 = scmp.ne.s32.totalorder %s181, %s182
      %p196 = scmp.eq.s32.totalorder %s22, 1
      %p197 = por %p195, %p196
      %p199 = scmp.ne.s32.totalorder %s182, %s198
      %p200 = scmp.eq.s32.totalorder %s22, 0
      %p201 = por %p199, %p200
      %p202 = scmp.le.s32.totalorder 1, %s16
      %p203 = scmp.lt.s32.totalorder %s16, 3
      %p204 = pnand %p202, %p203
      %p205 = pneg %p204
      // Predicated region
      $region9: #{tpu_custom_call.1} parent=5 // pred_check
        _
      $region10: #{tpu_custom_call.1} parent=5 // pred_check_branch
        %207 = sbr.rel (%p204) target = $region12
      $region11: #{tpu_custom_call.1} parent=5 // pred_region
        %s208 = ssub.s32 %s16, 1
        // Predicated region
        $region13: #{tpu_custom_call.1} parent=11 // pred_check
          %p209 = pneg %p63
        $region14: #{tpu_custom_call.1} parent=11 // pred_check_branch
          %211 = sbr.rel (%p209) target = $region16
        $region15: #{tpu_custom_call.1} parent=11 // pred_region
          _
        $region16: #{tpu_custom_call.1} parent=11 // pred_fallthru
          _
        // Predicated region
        $region17: #{tpu_custom_call.1} parent=11 // pred_check
          %p212 = pneg %p84
        $region18: #{tpu_custom_call.1} parent=11 // pred_check_branch
          %214 = sbr.rel (%p212) target = $region20
        $region19: #{tpu_custom_call.1} parent=11 // pred_region
          _
        $region20: #{tpu_custom_call.1} parent=11 // pred_fallthru
          _
        // Predicated region
        $region21: #{tpu_custom_call.1} parent=11 // pred_check
          %p215 = pneg %p105
        $region22: #{tpu_custom_call.1} parent=11 // pred_check_branch
          %217 = sbr.rel (%p215) target = $region24
        $region23: #{tpu_custom_call.1} parent=11 // pred_region
          _
        $region24: #{tpu_custom_call.1} parent=11 // pred_fallthru
          _
        // Predicated region
        $region25: #{tpu_custom_call.1} parent=11 // pred_check
          %p218 = pneg %p126
        $region26: #{tpu_custom_call.1} parent=11 // pred_check_branch
          %220 = sbr.rel (%p218) target = $region28
        $region27: #{tpu_custom_call.1} parent=11 // pred_region
          _
        $region28: #{tpu_custom_call.1} parent=11 // pred_fallthru
          _
        // Predicated region
        $region29: #{tpu_custom_call.1} parent=11 // pred_check
          %p221 = pneg %p147
        $region30: #{tpu_custom_call.1} parent=11 // pred_check_branch
          %223 = sbr.rel (%p221) target = $region32
        $region31: #{tpu_custom_call.1} parent=11 // pred_region
          _
        $region32: #{tpu_custom_call.1} parent=11 // pred_fallthru
          _
        // Predicated region
        $region33: #{tpu_custom_call.1} parent=11 // pred_check
          %p224 = pneg %p168
        $region34: #{tpu_custom_call.1} parent=11 // pred_check_branch
          %226 = sbr.rel (%p224) target = $region36
        $region35: #{tpu_custom_call.1} parent=11 // pred_region
          _
        $region36: #{tpu_custom_call.1} parent=11 // pred_fallthru
          _
      $region12: #{tpu_custom_call.1} parent=5 // pred_fallthru
        _
      %p227 = scmp.lt.s32.totalorder %s16, 2
      // Predicated region
      $region37: #{tpu_custom_call.1} parent=5 // pred_check
        %p228 = pneg %p227
      $region38: #{tpu_custom_call.1} parent=5 // pred_check_branch
        %230 = sbr.rel (%p228) target = $region40
      $region39: #{tpu_custom_call.1} parent=5 // pred_region
        // Predicated region
        $region41: #{tpu_custom_call.1} parent=39 // pred_check
          %p231 = pneg %p36
        $region42: #{tpu_custom_call.1} parent=39 // pred_check_branch
          %233 = sbr.rel (%p231) target = $region44
        $region43: #{tpu_custom_call.1} parent=39 // pred_region
          %s234 = smul.u32 16, %s16
          %p235 = scmp.lt.s32.totalorder %s234, 31
          %s236 = scalar_select %p235, %s234, 31
          %s237 = smul.addr %s236, 3
          %s238 = smul.addr %s237, 8
          %s239 = scalar_lea.vmem %s0, %s238
          %s240 = smul.u32 16, %s16
        $region44: #{tpu_custom_call.1} parent=39 // pred_fallthru
          _
      $region40: #{tpu_custom_call.1} parent=5 // pred_fallthru
        _
      %p241 = scmp.le.s32.totalorder 1, %s16
      %p242 = scmp.lt.s32.totalorder %s16, 3
      %p243 = pnand %p241, %p242
      %p244 = pneg %p243
      // Predicated region
      $region45: #{tpu_custom_call.1} parent=5 // pred_check
        _
      $region46: #{tpu_custom_call.1} parent=5 // pred_check_branch
        %246 = sbr.rel (%p243) target = $region48
      $region47: #{tpu_custom_call.1} parent=5 // pred_region
        %s247 = ssub.s32 %s16, 1
        %s248 = smul.u32 16, %s21
        %p249 = scmp.lt.s32.totalorder %s248, 31
        %s250 = scalar_select %p249, %s248, 31
        %s251 = smul.addr %s250, 3
        %s252 = smul.addr %s251, 8
        %s253 = scalar_lea.vmem %s0, %s252
        %p254 = pneg %p42
        %p255 = pneg %p39
        %p256 = pneg %p63
        %p257 = pneg %p60
        %p258 = pneg %p84
        %p259 = pneg %p81
        %p260 = pneg %p105
        %p261 = pneg %p102
        %p262 = pneg %p126
        %p263 = pneg %p123
        %p264 = pneg %p147
        %p265 = pneg %p144
        %p266 = pneg %p168
        %p267 = pneg %p165
        %p268 = pneg %p194
        %p269 = pneg %p191
        %s270 = sand.u32 %s181, 1
        %s271 = scalar_lea.sflag [#allocation3], %s270
        %s272 = sand.u32 %s181, 1
        %s273 = smul.addr %s272, 128
        %s274 = scalar_lea.vmem [#allocation2], %s273
        %s275 = smul.u32 16, %s21
        %p276 = scmp.lt.s32.totalorder %s275, 31
        %s277 = scalar_select %p276, %s275, 31
        %s278 = smul.addr %s277, 3
        %s279 = smul.addr %s278, 8
        %s280 = scalar_lea.vmem %s0, %s279
        %s281 = smul.u32 16, %s21
        %s282 = smul.u32 16, %s21
        %v283 = vld [vmem:[%s280] sm:$0xff]
        %v284 = vld [vmem:[%s280 + $0x8] sm:$0xff]
        %v285 = vld [vmem:[%s280 + $0x10] sm:$0xff]
        %v286 = vld [vmem:[%s280 + $0x18] sm:$0xff]
        %v287 = vld [vmem:[%s280 + $0x20] sm:$0xff]
        %v288 = vld [vmem:[%s280 + $0x28] sm:$0xff]
        %v289 = vld [vmem:[%s280 + $0x30] sm:$0xff]
        %v290 = vld [vmem:[%s280 + $0x38] sm:$0xff]
        %v291 = vld [vmem:[%s280 + $0x40] sm:$0xff]
        %v292 = vld [vmem:[%s280 + $0x48] sm:$0xff]
        %v293 = vld [vmem:[%s280 + $0x50] sm:$0xff]
        %v294 = vld [vmem:[%s280 + $0x58] sm:$0xff]
        %v295 = vld [vmem:[%s280 + $0x60] sm:$0xff]
        %v296 = vld [vmem:[%s280 + $0x68] sm:$0xff]
        %v297 = vld [vmem:[%s280 + $0x70] sm:$0xff]
        %v298 = vld [vmem:[%s280 + $0x78] sm:$0xff]
        %v299 = vld [vmem:[%s280 + $0x80] sm:$0xff]
        %v300 = vld [vmem:[%s280 + $0x88] sm:$0xff]
        %v301 = vld [vmem:[%s280 + $0x90] sm:$0xff]
        %v302 = vld [vmem:[%s280 + $0x98] sm:$0xff]
        %v303 = vld [vmem:[%s280 + $0xa0] sm:$0xff]
        %v304 = vld [vmem:[%s280 + $0xa8] sm:$0xff]
        %v305 = vld [vmem:[%s280 + $0xb0] sm:$0xff]
        %v306 = vld [vmem:[%s280 + $0xb8] sm:$0xff]
        %v307 = vld [vmem:[%s280 + $0xc0] sm:$0xff]
        %v308 = vld [vmem:[%s280 + $0xc8] sm:$0xff]
        %v309 = vld [vmem:[%s280 + $0xd0] sm:$0xff]
        %v310 = vld [vmem:[%s280 + $0xd8] sm:$0xff]
        %v311 = vld [vmem:[%s280 + $0xe0] sm:$0xff]
        %v312 = vld [vmem:[%s280 + $0xe8] sm:$0xff]
        %v313 = vld [vmem:[%s280 + $0xf0] sm:$0xff]
        %v314 = vld [vmem:[%s280 + $0xf8] sm:$0xff]
        %v315 = vld [vmem:[%s280 + $0x100] sm:$0xff]
        %v316 = vld [vmem:[%s280 + $0x108] sm:$0xff]
        %v317 = vld [vmem:[%s280 + $0x110] sm:$0xff]
        %v318 = vld [vmem:[%s280 + $0x118] sm:$0xff]
        %v319 = vld [vmem:[%s280 + $0x120] sm:$0xff]
        %v320 = vld [vmem:[%s280 + $0x128] sm:$0xff]
        %v321 = vld [vmem:[%s280 + $0x130] sm:$0xff]
        %v322 = vld [vmem:[%s280 + $0x138] sm:$0xff]
        %v323 = vld [vmem:[%s280 + $0x140] sm:$0xff]
        %v324 = vld [vmem:[%s280 + $0x148] sm:$0xff]
        %v325 = vld [vmem:[%s280 + $0x150] sm:$0xff]
        %v326 = vld [vmem:[%s280 + $0x158] sm:$0xff]
        %v327 = vld [vmem:[%s280 + $0x160] sm:$0xff]
        %v328 = vld [vmem:[%s280 + $0x168] sm:$0xff]
        %v329 = vld [vmem:[%s280 + $0x170] sm:$0xff]
        %v330 = vld [vmem:[%s280 + $0x178] sm:$0xff]
        %v331 = vld [vmem:[%s6] sm:$0xf]
        %v332 = vld [vmem:[%s1] sm:$0xff]
        %v333 = vld [vmem:[%s1 + $0x8] sm:$0xff]
        %v334 = vld [vmem:[%s1 + $0x10] sm:$0xff]
        %v335 = vld [vmem:[%s1 + $0x18] sm:$0xff]
        %v336 = vld [vmem:[%s1 + $0x20] sm:$0xff]
        %v337 = vld [vmem:[%s1 + $0x28] sm:$0xff]
        %v338 = vld [vmem:[%s1 + $0x30] sm:$0xff]
        %v339 = vld [vmem:[%s1 + $0x38] sm:$0xff]
        %v340 = vld [vmem:[%s1 + $0x40] sm:$0xff]
        %v341 = vld [vmem:[%s1 + $0x48] sm:$0xff]
        %v342 = vld [vmem:[%s1 + $0x50] sm:$0xff]
        %v343 = vld [vmem:[%s1 + $0x58] sm:$0xff]
        %v344 = vld [vmem:[%s1 + $0x60] sm:$0xff]
        %v345 = vld [vmem:[%s1 + $0x68] sm:$0xff]
        %v346 = vld [vmem:[%s1 + $0x70] sm:$0xff]
        %v347 = vld [vmem:[%s1 + $0x78] sm:$0xff]
        %v348 = vld [vmem:[%s1 + $0x80] sm:$0xff]
        %v349 = vld [vmem:[%s1 + $0x88] sm:$0xff]
        %v350 = vld [vmem:[%s1 + $0x90] sm:$0xff]
        %v351 = vld [vmem:[%s1 + $0x98] sm:$0xff]
        %v352 = vld [vmem:[%s1 + $0xa0] sm:$0xff]
        %v353 = vld [vmem:[%s1 + $0xa8] sm:$0xff]
        %v354 = vld [vmem:[%s1 + $0xb0] sm:$0xff]
        %v355 = vld [vmem:[%s1 + $0xb8] sm:$0xff]
        %v356 = vld [vmem:[%s1 + $0xc0] sm:$0xff]
        %v357 = vld [vmem:[%s1 + $0xc8] sm:$0xff]
        %v358 = vld [vmem:[%s1 + $0xd0] sm:$0xff]
        %v359 = vld [vmem:[%s1 + $0xd8] sm:$0xff]
        %v360 = vld [vmem:[%s1 + $0xe0] sm:$0xff]
        %v361 = vld [vmem:[%s1 + $0xe8] sm:$0xff]
        %v362 = vld [vmem:[%s1 + $0xf0] sm:$0xff]
        %v363 = vld [vmem:[%s1 + $0xf8] sm:$0xff]
        %v364 = vld [vmem:[%s1 + $0x100] sm:$0xff]
        %v365 = vld [vmem:[%s1 + $0x108] sm:$0xff]
        %v366 = vld [vmem:[%s1 + $0x110] sm:$0xff]
        %v367 = vld [vmem:[%s1 + $0x118] sm:$0xff]
        %v368 = vld [vmem:[%s1 + $0x120] sm:$0xff]
        %v369 = vld [vmem:[%s1 + $0x128] sm:$0xff]
        %v370 = vld [vmem:[%s1 + $0x130] sm:$0xff]
        %v371 = vld [vmem:[%s1 + $0x138] sm:$0xff]
        %v372 = vld [vmem:[%s1 + $0x140] sm:$0xff]
        %v373 = vld [vmem:[%s1 + $0x148] sm:$0xff]
        %v374 = vld [vmem:[%s1 + $0x150] sm:$0xff]
        %v375 = vld [vmem:[%s1 + $0x158] sm:$0xff]
        %v376 = vld [vmem:[%s1 + $0x160] sm:$0xff]
        %v377 = vld [vmem:[%s1 + $0x168] sm:$0xff]
        %v378 = vlaneseq
        %v379 = vshrl.u32 %v378, 7
        %v380 = vsub.s32 0, %v379
        %v381 = vrot.slane %v331, %v380
        %vm382 = vcmask 916480
        %v384 = vsel %vm382, %v285, 0
        %v387 = vsel %vm382, %v288, 0
        %v390 = vsel %vm382, %v291, 0
        %v393 = vsel %vm382, %v294, 0
        %v396 = vsel %vm382, %v297, 0
        %v399 = vsel %vm382, %v300, 0
        %v402 = vsel %vm382, %v303, 0
        %v405 = vsel %vm382, %v306, 0
        %v408 = vsel %vm382, %v309, 0
        %v411 = vsel %vm382, %v312, 0
        %v414 = vsel %vm382, %v315, 0
        %v417 = vsel %vm382, %v318, 0
        %v420 = vsel %vm382, %v321, 0
        %v423 = vsel %vm382, %v324, 0
        %v426 = vsel %vm382, %v327, 0
        %v429 = vsel %vm382, %v330, 0
        %431 = vmatprep.subr.mxu0 0.0
        %432 = vmatpush1.msra.mxu0 %v332
        %433 = vmatprep.subr.mxu0 0.0
        %434 = vmatpush1.msra.mxu0 %v333
        %435 = vmatprep.subr.mxu0 0.0
        %436 = vmatpush1.msra.mxu0 %v334
        %437 = vmatprep.subr.mxu0 0.0
        %438 = vmatpush1.msra.mxu0 %v335
        %439 = vmatprep.subr.mxu0 0.0
        %440 = vmatpush1.msra.mxu0 %v336
        %441 = vmatprep.subr.mxu0 0.0
        %442 = vmatpush1.msra.mxu0 %v337
        %443 = vmatprep.subr.mxu0 0.0
        %444 = vmatpush1.msra.mxu0 %v338
        %445 = vmatprep.subr.mxu0 0.0
        %446 = vmatpush1.msra.mxu0 %v339
        %447 = vmatprep.subr.mxu0 0.0
        %448 = vmatpush1.msra.mxu0 %v340
        %449 = vmatprep.subr.mxu0 0.0
        %450 = vmatpush1.msra.mxu0 %v341
        %451 = vmatprep.subr.mxu0 0.0
        %452 = vmatpush1.msra.mxu0 %v342
        %453 = vmatprep.subr.mxu0 0.0
        %454 = vmatpush1.msra.mxu0 %v343
        %455 = vmatprep.subr.mxu0 0.0
        %456 = vmatpush1.msra.mxu0 %v344
        %457 = vmatprep.subr.mxu0 0.0
        %458 = vmatpush1.msra.mxu0 %v345
        %459 = vmatprep.subr.mxu0 0.0
        %460 = vmatpush1.msra.mxu0 %v346
        %461 = vmatprep.subr.mxu0 0.0
        %462 = vmatpush1.msra.mxu0 %v347
        %463 = vmatprep.subr.mxu0 0.0
        %464 = vmatpush1.msra.mxu0 %v348
        %465 = vmatprep.subr.mxu0 0.0
        %466 = vmatpush1.msra.mxu0 %v349
        %467 = vmatprep.subr.mxu0 0.0
        %468 = vmatpush1.msra.mxu0 %v350
        %469 = vmatprep.subr.mxu0 0.0
        %470 = vmatpush1.msra.mxu0 %v351
        %471 = vmatprep.subr.mxu0 0.0
        %472 = vmatpush1.msra.mxu0 %v352
        %473 = vmatprep.subr.mxu0 0.0
        %474 = vmatpush1.msra.mxu0 %v353
        %475 = vmatprep.subr.mxu0 0.0
        %476 = vmatpush1.msra.mxu0 %v354
        %477 = vmatprep.subr.mxu0 0.0
        %478 = vmatpush1.msra.mxu0 %v355
        %479 = vmatprep.subr.mxu0 0.0
        %480 = vmatpush1.msra.mxu0 %v356
        %481 = vmatprep.subr.mxu0 0.0
        %482 = vmatpush1.msra.mxu0 %v357
        %483 = vmatprep.subr.mxu0 0.0
        %484 = vmatpush1.msra.mxu0 %v358
        %485 = vmatprep.subr.mxu0 0.0
        %486 = vmatpush1.msra.mxu0 %v359
        %487 = vmatprep.subr.mxu0 0.0
        %488 = vmatpush1.msra.mxu0 %v360
        %489 = vmatprep.subr.mxu0 0.0
        %490 = vmatpush1.msra.mxu0 %v361
        %491 = vmatprep.subr.mxu0 0.0
        %492 = vmatpush1.msra.mxu0 %v362
        %493 = vmatprep.subr.mxu0 0.0
        %494 = vmatpush1.msra.mxu0 %v363
        %495 = vmatprep.mubr.f32.mxu0 %v284
        %496 = vmatmul.mubr.f32.gmra.mrb[0].mxu0 %v283
        %v497 = vpop.f32.mrb[0].mxu0
        %v498 = vadd.f32 %v381, %v497
        %v499 = vpop.f32.mrb[0].mxu0
        %500 = vmatprep.mubr.f32.mxu0 %v287
        %501 = vmatmul.mubr.f32.gmra.mrb[0].mxu0 %v286
        %v502 = vpop.f32.mrb[0].mxu0
        %v503 = vadd.f32 %v381, %v502
        %v504 = vpop.f32.mrb[0].mxu0
        %505 = vmatprep.mubr.f32.mxu0 %v290
        %506 = vmatmul.mubr.f32.gmra.mrb[0].mxu0 %v289
        %v507 = vpop.f32.mrb[0].mxu0
        %v508 = vadd.f32 %v381, %v507
        %v509 = vpop.f32.mrb[0].mxu0
        %510 = vmatprep.mubr.f32.mxu0 %v293
        %511 = vmatmul.mubr.f32.gmra.mrb[0].mxu0 %v292
        %v512 = vpop.f32.mrb[0].mxu0
        %v513 = vadd.f32 %v381, %v512
        %v514 = vpop.f32.mrb[0].mxu0
        %515 = vmatprep.mubr.f32.mxu0 %v296
        %516 = vmatmul.mubr.f32.gmra.mrb[0].mxu0 %v295
        %v517 = vpop.f32.mrb[0].mxu0
        %v518 = vadd.f32 %v381, %v517
        %v519 = vpop.f32.mrb[0].mxu0
        %520 = vmatprep.mubr.f32.mxu0 %v299
        %521 = vmatmul.mubr.f32.gmra.mrb[0].mxu0 %v298
        %v522 = vpop.f32.mrb[0].mxu0
        %v523 = vadd.f32 %v381, %v522
        %v524 = vpop.f32.mrb[0].mxu0
        %525 = vmatprep.mubr.f32.mxu0 %v302
        %526 = vmatmul.mubr.f32.gmra.mrb[0].mxu0 %v301
        %v527 = vpop.f32.mrb[0].mxu0
        %v528 = vadd.f32 %v381, %v527
        %v529 = vpop.f32.mrb[0].mxu0
        %530 = vmatprep.mubr.f32.mxu0 %v305
        %531 = vmatmul.mubr.f32.gmra.mrb[0].mxu0 %v304
        %v532 = vpop.f32.mrb[0].mxu0
        %v533 = vadd.f32 %v381, %v532
        %v534 = vpop.f32.mrb[0].mxu0
        %535 = vmatprep.mubr.f32.mxu0 %v308
        %536 = vmatmul.mubr.f32.gmra.mrb[0].mxu0 %v307
        %v537 = vpop.f32.mrb[0].mxu0
        %v538 = vadd.f32 %v381, %v537
        %v539 = vpop.f32.mrb[0].mxu0
        %540 = vmatprep.mubr.f32.mxu0 %v311
        %541 = vmatmul.mubr.f32.gmra.mrb[0].mxu0 %v310
        %v542 = vpop.f32.mrb[0].mxu0
        %v543 = vadd.f32 %v381, %v542
        %v544 = vpop.f32.mrb[0].mxu0
        %545 = vmatprep.mubr.f32.mxu0 %v314
        %546 = vmatmul.mubr.f32.gmra.mrb[0].mxu0 %v313
        %v547 = vpop.f32.mrb[0].mxu0
        %v548 = vadd.f32 %v381, %v547
        %v549 = vpop.f32.mrb[0].mxu0
        %550 = vmatprep.mubr.f32.mxu0 %v317
        %551 = vmatmul.mubr.f32.gmra.mrb[0].mxu0 %v316
        %v552 = vpop.f32.mrb[0].mxu0
        %v553 = vadd.f32 %v381, %v552
        %v554 = vpop.f32.mrb[0].mxu0
        %555 = vmatprep.mubr.f32.mxu0 %v320
        %556 = vmatmul.mubr.f32.gmra.mrb[0].mxu0 %v319
        %v557 = vpop.f32.mrb[0].mxu0
        %v558 = vadd.f32 %v381, %v557
        %v559 = vpop.f32.mrb[0].mxu0
        %560 = vmatprep.mubr.f32.mxu0 %v323
        %561 = vmatmul.mubr.f32.gmra.mrb[0].mxu0 %v322
        %v562 = vpop.f32.mrb[0].mxu0
        %v563 = vadd.f32 %v381, %v562
        %v564 = vpop.f32.mrb[0].mxu0
        %565 = vmatprep.mubr.f32.mxu0 %v326
        %566 = vmatmul.mubr.f32.gmra.mrb[0].mxu0 %v325
        %v567 = vpop.f32.mrb[0].mxu0
        %v568 = vadd.f32 %v381, %v567
        %v569 = vpop.f32.mrb[0].mxu0
        %570 = vmatprep.mubr.f32.mxu0 %v329
        %571 = vmatmul.mubr.f32.gmra.mrb[0].mxu0 %v328
        %v572 = vpop.f32.mrb[0].mxu0
        %v573 = vadd.f32 %v381, %v572
        %v574 = vpop.f32.mrb[0].mxu0
        %575 = vdwg.mxu0
        %576 = vmatprep.subr.mxu0 0.0
        %577 = vmatpush1.msra.mxu0 %v364
        %578 = vmatprep.subr.mxu0 0.0
        %579 = vmatpush1.msra.mxu0 %v365
        %580 = vmatprep.subr.mxu0 0.0
        %581 = vmatpush1.msra.mxu0 %v366
        %582 = vmatprep.subr.mxu0 0.0
        %583 = vmatpush1.msra.mxu0 %v367
        %584 = vmatprep.subr.mxu0 0.0
        %585 = vmatpush1.msra.mxu0 %v368
        %586 = vmatprep.subr.mxu0 0.0
        %587 = vmatpush1.msra.mxu0 %v369
        %588 = vmatprep.subr.mxu0 0.0
        %589 = vmatpush1.msra.mxu0 %v370
        %590 = vmatprep.subr.mxu0 0.0
        %591 = vmatpush1.msra.mxu0 %v371
        %592 = vmatprep.subr.mxu0 0.0
        %593 = vmatpush1.msra.mxu0 %v372
        %594 = vmatprep.subr.mxu0 0.0
        %595 = vmatpush1.msra.mxu0 %v373
        %596 = vmatprep.subr.mxu0 0.0
        %597 = vmatpush1.msra.mxu0 %v374
        %598 = vmatprep.subr.mxu0 0.0
        %599 = vmatpush1.msra.mxu0 %v375
        %600 = vmatprep.subr.mxu0 0.0
        %601 = vmatpush1.msra.mxu0 %v376
        %602 = vmatprep.subr.mxu0 0.0
        %603 = vmatpush1.msra.mxu0 %v377
        %604 = vmatprep.subr.mxu0 0.0
        %605 = vmatpush1.msra.mxu0 0.0
        %606 = vmatprep.subr.mxu0 0.0
        %607 = vmatpush1.msra.mxu0 0.0
        %608 = vmatprep.subr.mxu0 0.0
        %609 = vmatpush1.msra.mxu0 0.0
        %610 = vmatprep.subr.mxu0 0.0
        %611 = vmatpush1.msra.mxu0 0.0
        %612 = vmatprep.subr.mxu0 0.0
        %613 = vmatpush1.msra.mxu0 0.0
        %614 = vmatprep.subr.mxu0 0.0
        %615 = vmatpush1.msra.mxu0 0.0
        %616 = vmatprep.subr.mxu0 0.0
        %617 = vmatpush1.msra.mxu0 0.0
        %618 = vmatprep.subr.mxu0 0.0
        %619 = vmatpush1.msra.mxu0 0.0
        %620 = vmatprep.subr.mxu0 0.0
        %621 = vmatpush1.msra.mxu0 0.0
        %622 = vmatprep.subr.mxu0 0.0
        %623 = vmatpush1.msra.mxu0 0.0
        %624 = vmatprep.subr.mxu0 0.0
        %625 = vmatpush1.msra.mxu0 0.0
        %626 = vmatprep.subr.mxu0 0.0
        %627 = vmatpush1.msra.mxu0 0.0
        %628 = vmatprep.subr.mxu0 0.0
        %629 = vmatpush1.msra.mxu0 0.0
        %630 = vmatprep.subr.mxu0 0.0
        %631 = vmatpush1.msra.mxu0 0.0
        %632 = vmatprep.subr.mxu0 0.0
        %633 = vmatpush1.msra.mxu0 0.0
        %634 = vmatprep.subr.mxu0 0.0
        %635 = vmatpush1.msra.mxu0 0.0
        %636 = vmatprep.subr.mxu0 0.0
        %637 = vmatpush1.msra.mxu0 0.0
        %638 = vmatprep.subr.mxu0 0.0
        %639 = vmatpush1.msra.mxu0 0.0
        %640 = vmatprep.mubr.f32.mxu0 0.0
        %641 = vmatmul.mubr.f32.gmra.mrb[0].mxu0 %v384
        %v642 = vpop.f32.mrb[0].mxu0
        %v643 = vadd.f32 %v498, %v642
        %v644 = vpop.f32.mrb[0].mxu0
        %645 = vmatprep.mubr.f32.mxu0 0.0
        %646 = vmatmul.mubr.f32.gmra.mrb[0].mxu0 %v387
        %v647 = vpop.f32.mrb[0].mxu0
        %v648 = vadd.f32 %v503, %v647
        %v649 = vpop.f32.mrb[0].mxu0
        %650 = vmatprep.mubr.f32.mxu0 0.0
        %651 = vmatmul.mubr.f32.gmra.mrb[0].mxu0 %v390
        %v652 = vpop.f32.mrb[0].mxu0
        %v653 = vadd.f32 %v508, %v652
        %v654 = vpop.f32.mrb[0].mxu0
        %655 = vmatprep.mubr.f32.mxu0 0.0
        %656 = vmatmul.mubr.f32.gmra.mrb[0].mxu0 %v393
        %v657 = vpop.f32.mrb[0].mxu0
        %v658 = vadd.f32 %v513, %v657
        %v659 = vpop.f32.mrb[0].mxu0
        %660 = vmatprep.mubr.f32.mxu0 0.0
        %661 = vmatmul.mubr.f32.gmra.mrb[0].mxu0 %v396
        %v662 = vpop.f32.mrb[0].mxu0
        %v663 = vadd.f32 %v518, %v662
        %v664 = vpop.f32.mrb[0].mxu0
        %665 = vmatprep.mubr.f32.mxu0 0.0
        %666 = vmatmul.mubr.f32.gmra.mrb[0].mxu0 %v399
        %v667 = vpop.f32.mrb[0].mxu0
        %v668 = vadd.f32 %v523, %v667
        %v669 = vpop.f32.mrb[0].mxu0
        %670 = vmatprep.mubr.f32.mxu0 0.0
        %671 = vmatmul.mubr.f32.gmra.mrb[0].mxu0 %v402
        %v672 = vpop.f32.mrb[0].mxu0
        %v673 = vadd.f32 %v528, %v672
        %v674 = vpop.f32.mrb[0].mxu0
        %675 = vmatprep.mubr.f32.mxu0 0.0
        %676 = vmatmul.mubr.f32.gmra.mrb[0].mxu0 %v405
        %v677 = vpop.f32.mrb[0].mxu0
        %v678 = vadd.f32 %v533, %v677
        %v679 = vpop.f32.mrb[0].mxu0
        %680 = vmatprep.mubr.f32.mxu0 0.0
        %681 = vmatmul.mubr.f32.gmra.mrb[0].mxu0 %v408
        %v682 = vpop.f32.mrb[0].mxu0
        %v683 = vadd.f32 %v538, %v682
        %v684 = vpop.f32.mrb[0].mxu0
        %685 = vmatprep.mubr.f32.mxu0 0.0
        %686 = vmatmul.mubr.f32.gmra.mrb[0].mxu0 %v411
        %v687 = vpop.f32.mrb[0].mxu0
        %v688 = vadd.f32 %v543, %v687
        %v689 = vpop.f32.mrb[0].mxu0
        %690 = vmatprep.mubr.f32.mxu0 0.0
        %691 = vmatmul.mubr.f32.gmra.mrb[0].mxu0 %v414
        %v692 = vpop.f32.mrb[0].mxu0
        %v693 = vadd.f32 %v548, %v692
        %v694 = vpop.f32.mrb[0].mxu0
        %695 = vmatprep.mubr.f32.mxu0 0.0
        %696 = vmatmul.mubr.f32.gmra.mrb[0].mxu0 %v417
        %v697 = vpop.f32.mrb[0].mxu0
        %v698 = vadd.f32 %v553, %v697
        %v699 = vpop.f32.mrb[0].mxu0
        %700 = vmatprep.mubr.f32.mxu0 0.0
        %701 = vmatmul.mubr.f32.gmra.mrb[0].mxu0 %v420
        %v702 = vpop.f32.mrb[0].mxu0
        %v703 = vadd.f32 %v558, %v702
        %v704 = vpop.f32.mrb[0].mxu0
        %705 = vmatprep.mubr.f32.mxu0 0.0
        %706 = vmatmul.mubr.f32.gmra.mrb[0].mxu0 %v423
        %v707 = vpop.f32.mrb[0].mxu0
        %v708 = vadd.f32 %v563, %v707
        %v709 = vpop.f32.mrb[0].mxu0
        %710 = vmatprep.mubr.f32.mxu0 0.0
        %711 = vmatmul.mubr.f32.gmra.mrb[0].mxu0 %v426
        %v712 = vpop.f32.mrb[0].mxu0
        %v713 = vadd.f32 %v568, %v712
        %v714 = vpop.f32.mrb[0].mxu0
        %715 = vmatprep.mubr.f32.mxu0 0.0
        %716 = vmatmul.mubr.f32.gmra.mrb[0].mxu0 %v429
        %v717 = vpop.f32.mrb[0].mxu0
        %v718 = vadd.f32 %v573, %v717
        %v719 = vpop.f32.mrb[0].mxu0
        %720 = vdwg.mxu0
        %v721 = vmax.f32 %v643, 0.0
        %v722 = vmax.f32 %v648, 0.0
        %v723 = vmax.f32 %v653, 0.0
        %v724 = vmax.f32 %v658, 0.0
        %v725 = vmax.f32 %v663, 0.0
        %v726 = vmax.f32 %v668, 0.0
        %v727 = vmax.f32 %v673, 0.0
        %v728 = vmax.f32 %v678, 0.0
        %v729 = vmax.f32 %v683, 0.0
        %v730 = vmax.f32 %v688, 0.0
        %v731 = vmax.f32 %v693, 0.0
        %v732 = vmax.f32 %v698, 0.0
        %v733 = vmax.f32 %v703, 0.0
        %v734 = vmax.f32 %v708, 0.0
        %v735 = vmax.f32 %v713, 0.0
        %v736 = vmax.f32 %v718, 0.0
        %v737 = vld [vmem:[%s2] sm:$0xff]
        %v738 = vld [vmem:[%s2 + $0x8] sm:$0xff]
        %v739 = vld [vmem:[%s2 + $0x10] sm:$0xff]
        %v740 = vld [vmem:[%s2 + $0x18] sm:$0xff]
        %v741 = vld [vmem:[%s2 + $0x20] sm:$0xff]
        %v742 = vld [vmem:[%s2 + $0x28] sm:$0xff]
        %v743 = vld [vmem:[%s2 + $0x30] sm:$0xff]
        %v744 = vld [vmem:[%s2 + $0x38] sm:$0xff]
        %v745 = vld [vmem:[%s2 + $0x40] sm:$0xff]
        %v746 = vld [vmem:[%s2 + $0x48] sm:$0xff]
        %v747 = vld [vmem:[%s2 + $0x50] sm:$0xff]
        %v748 = vld [vmem:[%s2 + $0x58] sm:$0xff]
        %v749 = vld [vmem:[%s2 + $0x60] sm:$0xff]
        %v750 = vld [vmem:[%s2 + $0x68] sm:$0xff]
        %v751 = vld [vmem:[%s2 + $0x70] sm:$0xff]
        %v752 = vld [vmem:[%s2 + $0x78] sm:$0xff]
        %v753 = vlaneseq
        %v754 = vshrl.u32 %v753, 7
        %v755 = vsub.s32 1, %v754
        %v756 = vrot.slane %v331, %v755
        %757 = vmatprep.subr.mxu0 0.0
        %758 = vmatpush1.msra.mxu0 %v737
        %759 = vmatprep.subr.mxu0 0.0
        %760 = vmatpush1.msra.mxu0 %v738
        %761 = vmatprep.subr.mxu0 0.0
        %762 = vmatpush1.msra.mxu0 %v739
        %763 = vmatprep.subr.mxu0 0.0
        %764 = vmatpush1.msra.mxu0 %v740
        %765 = vmatprep.subr.mxu0 0.0
        %766 = vmatpush1.msra.mxu0 %v741
        %767 = vmatprep.subr.mxu0 0.0
        %768 = vmatpush1.msra.mxu0 %v742
        %769 = vmatprep.subr.mxu0 0.0
        %770 = vmatpush1.msra.mxu0 %v743
        %771 = vmatprep.subr.mxu0 0.0
        %772 = vmatpush1.msra.mxu0 %v744
        %773 = vmatprep.subr.mxu0 0.0
        %774 = vmatpush1.msra.mxu0 %v745
        %775 = vmatprep.subr.mxu0 0.0
        %776 = vmatpush1.msra.mxu0 %v746
        %777 = vmatprep.subr.mxu0 0.0
        %778 = vmatpush1.msra.mxu0 %v747
        %779 = vmatprep.subr.mxu0 0.0
        %780 = vmatpush1.msra.mxu0 %v748
        %781 = vmatprep.subr.mxu0 0.0
        %782 = vmatpush1.msra.mxu0 %v749
        %783 = vmatprep.subr.mxu0 0.0
        %784 = vmatpush1.msra.mxu0 %v750
        %785 = vmatprep.subr.mxu0 0.0
        %786 = vmatpush1.msra.mxu0 %v751
        %787 = vmatprep.subr.mxu0 0.0
        %788 = vmatpush1.msra.mxu0 %v752
        %789 = vmatprep.subr.mxu0 0.0
        %790 = vmatpush1.msra.mxu0 0.0
        %791 = vmatprep.subr.mxu0 0.0
        %792 = vmatpush1.msra.mxu0 0.0
        %793 = vmatprep.subr.mxu0 0.0
        %794 = vmatpush1.msra.mxu0 0.0
        %795 = vmatprep.subr.mxu0 0.0
        %796 = vmatpush1.msra.mxu0 0.0
        %797 = vmatprep.subr.mxu0 0.0
        %798 = vmatpush1.msra.mxu0 0.0
        %799 = vmatprep.subr.mxu0 0.0
        %800 = vmatpush1.msra.mxu0 0.0
        %801 = vmatprep.subr.mxu0 0.0
        %802 = vmatpush1.msra.mxu0 0.0
        %803 = vmatprep.subr.mxu0 0.0
        %804 = vmatpush1.msra.mxu0 0.0
        %805 = vmatprep.subr.mxu0 0.0
        %806 = vmatpush1.msra.mxu0 0.0
        %807 = vmatprep.subr.mxu0 0.0
        %808 = vmatpush1.msra.mxu0 0.0
        %809 = vmatprep.subr.mxu0 0.0
        %810 = vmatpush1.msra.mxu0 0.0
        %811 = vmatprep.subr.mxu0 0.0
        %812 = vmatpush1.msra.mxu0 0.0
        %813 = vmatprep.subr.mxu0 0.0
        %814 = vmatpush1.msra.mxu0 0.0
        %815 = vmatprep.subr.mxu0 0.0
        %816 = vmatpush1.msra.mxu0 0.0
        %817 = vmatprep.subr.mxu0 0.0
        %818 = vmatpush1.msra.mxu0 0.0
        %819 = vmatprep.subr.mxu0 0.0
        %820 = vmatpush1.msra.mxu0 0.0
        %821 = vmatprep.mubr.f32.mxu0 0.0
        %822 = vmatmul.mubr.f32.gmra.mrb[0].mxu0 %v721
        %v823 = vpop.f32.mrb[0].mxu0
        %v824 = vadd.f32 %v756, %v823
        %v825 = vpop.f32.mrb[0].mxu0
        %826 = vmatprep.mubr.f32.mxu0 0.0
        %827 = vmatmul.mubr.f32.gmra.mrb[0].mxu0 %v722
        %v828 = vpop.f32.mrb[0].mxu0
        %v829 = vadd.f32 %v756, %v828
        %v830 = vpop.f32.mrb[0].mxu0
        %831 = vmatprep.mubr.f32.mxu0 0.0
        %832 = vmatmul.mubr.f32.gmra.mrb[0].mxu0 %v723
        %v833 = vpop.f32.mrb[0].mxu0
        %v834 = vadd.f32 %v756, %v833
        %v835 = vpop.f32.mrb[0].mxu0
        %836 = vmatprep.mubr.f32.mxu0 0.0
        %837 = vmatmul.mubr.f32.gmra.mrb[0].mxu0 %v724
        %v838 = vpop.f32.mrb[0].mxu0
        %v839 = vadd.f32 %v756, %v838
        %v840 = vpop.f32.mrb[0].mxu0
        %841 = vmatprep.mubr.f32.mxu0 0.0
        %842 = vmatmul.mubr.f32.gmra.mrb[0].mxu0 %v725
        %v843 = vpop.f32.mrb[0].mxu0
        %v844 = vadd.f32 %v756, %v843
        %v845 = vpop.f32.mrb[0].mxu0
        %846 = vmatprep.mubr.f32.mxu0 0.0
        %847 = vmatmul.mubr.f32.gmra.mrb[0].mxu0 %v726
        %v848 = vpop.f32.mrb[0].mxu0
        %v849 = vadd.f32 %v756, %v848
        %v850 = vpop.f32.mrb[0].mxu0
        %851 = vmatprep.mubr.f32.mxu0 0.0
        %852 = vmatmul.mubr.f32.gmra.mrb[0].mxu0 %v727
        %v853 = vpop.f32.mrb[0].mxu0
        %v854 = vadd.f32 %v756, %v853
        %v855 = vpop.f32.mrb[0].mxu0
        %856 = vmatprep.mubr.f32.mxu0 0.0
        %857 = vmatmul.mubr.f32.gmra.mrb[0].mxu0 %v728
        %v858 = vpop.f32.mrb[0].mxu0
        %v859 = vadd.f32 %v756, %v858
        %v860 = vpop.f32.mrb[0].mxu0
        %861 = vmatprep.mubr.f32.mxu0 0.0
        %862 = vmatmul.mubr.f32.gmra.mrb[0].mxu0 %v729
        %v863 = vpop.f32.mrb[0].mxu0
        %v864 = vadd.f32 %v756, %v863
        %v865 = vpop.f32.mrb[0].mxu0
        %866 = vmatprep.mubr.f32.mxu0 0.0
        %867 = vmatmul.mubr.f32.gmra.mrb[0].mxu0 %v730
        %v868 = vpop.f32.mrb[0].mxu0
        %v869 = vadd.f32 %v756, %v868
        %v870 = vpop.f32.mrb[0].mxu0
        %871 = vmatprep.mubr.f32.mxu0 0.0
        %872 = vmatmul.mubr.f32.gmra.mrb[0].mxu0 %v731
        %v873 = vpop.f32.mrb[0].mxu0
        %v874 = vadd.f32 %v756, %v873
        %v875 = vpop.f32.mrb[0].mxu0
        %876 = vmatprep.mubr.f32.mxu0 0.0
        %877 = vmatmul.mubr.f32.gmra.mrb[0].mxu0 %v732
        %v878 = vpop.f32.mrb[0].mxu0
        %v879 = vadd.f32 %v756, %v878
        %v880 = vpop.f32.mrb[0].mxu0
        %881 = vmatprep.mubr.f32.mxu0 0.0
        %882 = vmatmul.mubr.f32.gmra.mrb[0].mxu0 %v733
        %v883 = vpop.f32.mrb[0].mxu0
        %v884 = vadd.f32 %v756, %v883
        %v885 = vpop.f32.mrb[0].mxu0
        %886 = vmatprep.mubr.f32.mxu0 0.0
        %887 = vmatmul.mubr.f32.gmra.mrb[0].mxu0 %v734
        %v888 = vpop.f32.mrb[0].mxu0
        %v889 = vadd.f32 %v756, %v888
        %v890 = vpop.f32.mrb[0].mxu0
        %891 = vmatprep.mubr.f32.mxu0 0.0
        %892 = vmatmul.mubr.f32.gmra.mrb[0].mxu0 %v735
        %v893 = vpop.f32.mrb[0].mxu0
        %v894 = vadd.f32 %v756, %v893
        %v895 = vpop.f32.mrb[0].mxu0
        %896 = vmatprep.mubr.f32.mxu0 0.0
        %897 = vmatmul.mubr.f32.gmra.mrb[0].mxu0 %v736
        %v898 = vpop.f32.mrb[0].mxu0
        %v899 = vadd.f32 %v756, %v898
        %v900 = vpop.f32.mrb[0].mxu0
        %901 = vdwg.mxu0
        %v902 = vld [vmem:[%s3] sm:$0xff]
        %v903 = vld [vmem:[%s3 + $0x8] sm:$0xff]
        %v904 = vld [vmem:[%s3 + $0x10] sm:$0xff]
        %v905 = vld [vmem:[%s3 + $0x18] sm:$0xff]
        %v906 = vld [vmem:[%s4] sm:$0xff]
        %v907 = vld [vmem:[%s4 + $0x8] sm:$0xff]
        %v908 = vld [vmem:[%s4 + $0x10] sm:$0xff]
        %v909 = vld [vmem:[%s4 + $0x18] sm:$0xff]
        %v910 = vld [vmem:[%s4 + $0x20] sm:$0xff]
        %v911 = vld [vmem:[%s4 + $0x28] sm:$0xff]
        %v912 = vld [vmem:[%s4 + $0x30] sm:$0xff]
        %v913 = vld [vmem:[%s4 + $0x38] sm:$0xff]
        %v914 = vld [vmem:[%s4 + $0x40] sm:$0xff]
        %v915 = vld [vmem:[%s4 + $0x48] sm:$0xff]
        %v916 = vld [vmem:[%s4 + $0x50] sm:$0xff]
        %v917 = vld [vmem:[%s4 + $0x58] sm:$0xff]
        %v918 = vld [vmem:[%s4 + $0x60] sm:$0xff]
        %v919 = vld [vmem:[%s4 + $0x68] sm:$0xff]
        %v920 = vld [vmem:[%s4 + $0x70] sm:$0xff]
        %v921 = vld [vmem:[%s4 + $0x78] sm:$0xff]
        %922 = vmatprep.subr.mxu0 0.0
        %923 = vmatpush1.msra.mxu0 %v906
        %924 = vmatprep.subr.mxu0 0.0
        %925 = vmatpush1.msra.mxu0 %v907
        %926 = vmatprep.subr.mxu0 0.0
        %927 = vmatpush1.msra.mxu0 %v908
        %928 = vmatprep.subr.mxu0 0.0
        %929 = vmatpush1.msra.mxu0 %v909
        %930 = vmatprep.subr.mxu0 0.0
        %931 = vmatpush1.msra.mxu0 %v910
        %932 = vmatprep.subr.mxu0 0.0
        %933 = vmatpush1.msra.mxu0 %v911
        %934 = vmatprep.subr.mxu0 0.0
        %935 = vmatpush1.msra.mxu0 %v912
        %936 = vmatprep.subr.mxu0 0.0
        %937 = vmatpush1.msra.mxu0 %v913
        %938 = vmatprep.subr.mxu0 0.0
        %939 = vmatpush1.msra.mxu0 %v914
        %940 = vmatprep.subr.mxu0 0.0
        %941 = vmatpush1.msra.mxu0 %v915
        %942 = vmatprep.subr.mxu0 0.0
        %943 = vmatpush1.msra.mxu0 %v916
        %944 = vmatprep.subr.mxu0 0.0
        %945 = vmatpush1.msra.mxu0 %v917
        %946 = vmatprep.subr.mxu0 0.0
        %947 = vmatpush1.msra.mxu0 %v918
        %948 = vmatprep.subr.mxu0 0.0
        %949 = vmatpush1.msra.mxu0 %v919
        %950 = vmatprep.subr.mxu0 0.0
        %951 = vmatpush1.msra.mxu0 %v920
        %952 = vmatprep.subr.mxu0 0.0
        %953 = vmatpush1.msra.mxu0 %v921
        %954 = vmatprep.subr.mxu0 0.0
        %955 = vmatpush1.msra.mxu0 0.0
        %956 = vmatprep.subr.mxu0 0.0
        %957 = vmatpush1.msra.mxu0 0.0
        %958 = vmatprep.subr.mxu0 0.0
        %959 = vmatpush1.msra.mxu0 0.0
        %960 = vmatprep.subr.mxu0 0.0
        %961 = vmatpush1.msra.mxu0 0.0
        %962 = vmatprep.subr.mxu0 0.0
        %963 = vmatpush1.msra.mxu0 0.0
        %964 = vmatprep.subr.mxu0 0.0
        %965 = vmatpush1.msra.mxu0 0.0
        %966 = vmatprep.subr.mxu0 0.0
        %967 = vmatpush1.msra.mxu0 0.0
        %968 = vmatprep.subr.mxu0 0.0
        %969 = vmatpush1.msra.mxu0 0.0
        %970 = vmatprep.subr.mxu0 0.0
        %971 = vmatpush1.msra.mxu0 0.0
        %972 = vmatprep.subr.mxu0 0.0
        %973 = vmatpush1.msra.mxu0 0.0
        %974 = vmatprep.subr.mxu0 0.0
        %975 = vmatpush1.msra.mxu0 0.0
        %976 = vmatprep.subr.mxu0 0.0
        %977 = vmatpush1.msra.mxu0 0.0
        %978 = vmatprep.subr.mxu0 0.0
        %979 = vmatpush1.msra.mxu0 0.0
        %980 = vmatprep.subr.mxu0 0.0
        %981 = vmatpush1.msra.mxu0 0.0
        %982 = vmatprep.subr.mxu0 0.0
        %983 = vmatpush1.msra.mxu0 0.0
        %984 = vmatprep.subr.mxu0 0.0
        %985 = vmatpush1.msra.mxu0 0.0
        %986 = vmatprep.mubr.f32.mxu0 0.0
        %987 = vmatmul.mubr.f32.gmra.mrb[0].mxu0 %v824
        %v988 = vpop.f32.mrb[0].mxu0
        %v989 = vadd.f32 0.0, %v988
        %v990 = vpop.f32.mrb[0].mxu0
        %991 = vmatprep.mubr.f32.mxu0 0.0
        %992 = vmatmul.mubr.f32.gmra.mrb[0].mxu0 %v829
        %v993 = vpop.f32.mrb[0].mxu0
        %v994 = vadd.f32 0.0, %v993
        %v995 = vpop.f32.mrb[0].mxu0
        %996 = vmatprep.mubr.f32.mxu0 0.0
        %997 = vmatmul.mubr.f32.gmra.mrb[0].mxu0 %v834
        %v998 = vpop.f32.mrb[0].mxu0
        %v999 = vadd.f32 0.0, %v998
        %v1000 = vpop.f32.mrb[0].mxu0
        %1001 = vmatprep.mubr.f32.mxu0 0.0
        %1002 = vmatmul.mubr.f32.gmra.mrb[0].mxu0 %v839
        %v1003 = vpop.f32.mrb[0].mxu0
        %v1004 = vadd.f32 0.0, %v1003
        %v1005 = vpop.f32.mrb[0].mxu0
        %1006 = vmatprep.mubr.f32.mxu0 0.0
        %1007 = vmatmul.mubr.f32.gmra.mrb[0].mxu0 %v844
        %v1008 = vpop.f32.mrb[0].mxu0
        %v1009 = vadd.f32 0.0, %v1008
        %v1010 = vpop.f32.mrb[0].mxu0
        %1011 = vmatprep.mubr.f32.mxu0 0.0
        %1012 = vmatmul.mubr.f32.gmra.mrb[0].mxu0 %v849
        %v1013 = vpop.f32.mrb[0].mxu0
        %v1014 = vadd.f32 0.0, %v1013
        %v1015 = vpop.f32.mrb[0].mxu0
        %1016 = vmatprep.mubr.f32.mxu0 0.0
        %1017 = vmatmul.mubr.f32.gmra.mrb[0].mxu0 %v854
        %v1018 = vpop.f32.mrb[0].mxu0
        %v1019 = vadd.f32 0.0, %v1018
        %v1020 = vpop.f32.mrb[0].mxu0
        %1021 = vmatprep.mubr.f32.mxu0 0.0
        %1022 = vmatmul.mubr.f32.gmra.mrb[0].mxu0 %v859
        %v1023 = vpop.f32.mrb[0].mxu0
        %v1024 = vadd.f32 0.0, %v1023
        %v1025 = vpop.f32.mrb[0].mxu0
        %1026 = vmatprep.mubr.f32.mxu0 0.0
        %1027 = vmatmul.mubr.f32.gmra.mrb[0].mxu0 %v864
        %v1028 = vpop.f32.mrb[0].mxu0
        %v1029 = vadd.f32 0.0, %v1028
        %v1030 = vpop.f32.mrb[0].mxu0
        %1031 = vmatprep.mubr.f32.mxu0 0.0
        %1032 = vmatmul.mubr.f32.gmra.mrb[0].mxu0 %v869
        %v1033 = vpop.f32.mrb[0].mxu0
        %v1034 = vadd.f32 0.0, %v1033
        %v1035 = vpop.f32.mrb[0].mxu0
        %1036 = vmatprep.mubr.f32.mxu0 0.0
        %1037 = vmatmul.mubr.f32.gmra.mrb[0].mxu0 %v874
        %v1038 = vpop.f32.mrb[0].mxu0
        %v1039 = vadd.f32 0.0, %v1038
        %v1040 = vpop.f32.mrb[0].mxu0
        %1041 = vmatprep.mubr.f32.mxu0 0.0
        %1042 = vmatmul.mubr.f32.gmra.mrb[0].mxu0 %v879
        %v1043 = vpop.f32.mrb[0].mxu0
        %v1044 = vadd.f32 0.0, %v1043
        %v1045 = vpop.f32.mrb[0].mxu0
        %1046 = vmatprep.mubr.f32.mxu0 0.0
        %1047 = vmatmul.mubr.f32.gmra.mrb[0].mxu0 %v884
        %v1048 = vpop.f32.mrb[0].mxu0
        %v1049 = vadd.f32 0.0, %v1048
        %v1050 = vpop.f32.mrb[0].mxu0
        %1051 = vmatprep.mubr.f32.mxu0 0.0
        %1052 = vmatmul.mubr.f32.gmra.mrb[0].mxu0 %v889
        %v1053 = vpop.f32.mrb[0].mxu0
        %v1054 = vadd.f32 0.0, %v1053
        %v1055 = vpop.f32.mrb[0].mxu0
        %1056 = vmatprep.mubr.f32.mxu0 0.0
        %1057 = vmatmul.mubr.f32.gmra.mrb[0].mxu0 %v894
        %v1058 = vpop.f32.mrb[0].mxu0
        %v1059 = vadd.f32 0.0, %v1058
        %v1060 = vpop.f32.mrb[0].mxu0
        %1061 = vmatprep.mubr.f32.mxu0 0.0
        %1062 = vmatmul.mubr.f32.gmra.mrb[0].mxu0 %v899
        %v1063 = vpop.f32.mrb[0].mxu0
        %v1064 = vadd.f32 0.0, %v1063
        %v1065 = vpop.f32.mrb[0].mxu0
        %1066 = vdwg.mxu0
        %vm1067 = vcmask 261120
        %v1069 = vsel %vm1067, %v283, 0
        %v1072 = vsel %vm1067, %v286, 0
        %v1075 = vsel %vm1067, %v289, 0
        %v1078 = vsel %vm1067, %v292, 0
        %v1081 = vsel %vm1067, %v295, 0
        %v1084 = vsel %vm1067, %v298, 0
        %v1087 = vsel %vm1067, %v301, 0
        %v1090 = vsel %vm1067, %v304, 0
        %v1093 = vsel %vm1067, %v307, 0
        %v1096 = vsel %vm1067, %v310, 0
        %v1099 = vsel %vm1067, %v313, 0
        %v1102 = vsel %vm1067, %v316, 0
        %v1105 = vsel %vm1067, %v319, 0
        %v1108 = vsel %vm1067, %v322, 0
        %v1111 = vsel %vm1067, %v325, 0
        %v1114 = vsel %vm1067, %v328, 0
        %1116 = vmatprep.subr.mxu0 0.0
        %1117 = vmatpush1.msra.mxu0 %v902
        %1118 = vmatprep.subr.mxu0 0.0
        %1119 = vmatpush1.msra.mxu0 %v903
        %1120 = vmatprep.subr.mxu0 0.0
        %1121 = vmatpush1.msra.mxu0 %v904
        %1122 = vmatprep.subr.mxu0 0.0
        %1123 = vmatpush1.msra.mxu0 %v905
        %1124 = vmatprep.subr.mxu0 0.0
        %1125 = vmatpush1.msra.mxu0 0.0
        %1126 = vmatprep.subr.mxu0 0.0
        %1127 = vmatpush1.msra.mxu0 0.0
        %1128 = vmatprep.subr.mxu0 0.0
        %1129 = vmatpush1.msra.mxu0 0.0
        %1130 = vmatprep.subr.mxu0 0.0
        %1131 = vmatpush1.msra.mxu0 0.0
        %1132 = vmatprep.subr.mxu0 0.0
        %1133 = vmatpush1.msra.mxu0 0.0
        %1134 = vmatprep.subr.mxu0 0.0
        %1135 = vmatpush1.msra.mxu0 0.0
        %1136 = vmatprep.subr.mxu0 0.0
        %1137 = vmatpush1.msra.mxu0 0.0
        %1138 = vmatprep.subr.mxu0 0.0
        %1139 = vmatpush1.msra.mxu0 0.0
        %1140 = vmatprep.subr.mxu0 0.0
        %1141 = vmatpush1.msra.mxu0 0.0
        %1142 = vmatprep.subr.mxu0 0.0
        %1143 = vmatpush1.msra.mxu0 0.0
        %1144 = vmatprep.subr.mxu0 0.0
        %1145 = vmatpush1.msra.mxu0 0.0
        %1146 = vmatprep.subr.mxu0 0.0
        %1147 = vmatpush1.msra.mxu0 0.0
        %1148 = vmatprep.subr.mxu0 0.0
        %1149 = vmatpush1.msra.mxu0 0.0
        %1150 = vmatprep.subr.mxu0 0.0
        %1151 = vmatpush1.msra.mxu0 0.0
        %1152 = vmatprep.subr.mxu0 0.0
        %1153 = vmatpush1.msra.mxu0 0.0
        %1154 = vmatprep.subr.mxu0 0.0
        %1155 = vmatpush1.msra.mxu0 0.0
        %1156 = vmatprep.subr.mxu0 0.0
        %1157 = vmatpush1.msra.mxu0 0.0
        %1158 = vmatprep.subr.mxu0 0.0
        %1159 = vmatpush1.msra.mxu0 0.0
        %1160 = vmatprep.subr.mxu0 0.0
        %1161 = vmatpush1.msra.mxu0 0.0
        %1162 = vmatprep.subr.mxu0 0.0
        %1163 = vmatpush1.msra.mxu0 0.0
        %1164 = vmatprep.subr.mxu0 0.0
        %1165 = vmatpush1.msra.mxu0 0.0
        %1166 = vmatprep.subr.mxu0 0.0
        %1167 = vmatpush1.msra.mxu0 0.0
        %1168 = vmatprep.subr.mxu0 0.0
        %1169 = vmatpush1.msra.mxu0 0.0
        %1170 = vmatprep.subr.mxu0 0.0
        %1171 = vmatpush1.msra.mxu0 0.0
        %1172 = vmatprep.subr.mxu0 0.0
        %1173 = vmatpush1.msra.mxu0 0.0
        %1174 = vmatprep.subr.mxu0 0.0
        %1175 = vmatpush1.msra.mxu0 0.0
        %1176 = vmatprep.subr.mxu0 0.0
        %1177 = vmatpush1.msra.mxu0 0.0
        %1178 = vmatprep.subr.mxu0 0.0
        %1179 = vmatpush1.msra.mxu0 0.0
        %1180 = vmatprep.mubr.f32.mxu0 0.0
        %1181 = vmatmul.mubr.f32.gmra.mrb[0].mxu0 %v1069
        %v1182 = vpop.f32.mrb[0].mxu0
        %v1183 = vadd.f32 %v989, %v1182
        %v1184 = vpop.f32.mrb[0].mxu0
        %1185 = vmatprep.mubr.f32.mxu0 0.0
        %1186 = vmatmul.mubr.f32.gmra.mrb[0].mxu0 %v1072
        %v1187 = vpop.f32.mrb[0].mxu0
        %v1188 = vadd.f32 %v994, %v1187
        %v1189 = vpop.f32.mrb[0].mxu0
        %1190 = vmatprep.mubr.f32.mxu0 0.0
        %1191 = vmatmul.mubr.f32.gmra.mrb[0].mxu0 %v1075
        %v1192 = vpop.f32.mrb[0].mxu0
        %v1193 = vadd.f32 %v999, %v1192
        %v1194 = vpop.f32.mrb[0].mxu0
        %1195 = vmatprep.mubr.f32.mxu0 0.0
        %1196 = vmatmul.mubr.f32.gmra.mrb[0].mxu0 %v1078
        %v1197 = vpop.f32.mrb[0].mxu0
        %v1198 = vadd.f32 %v1004, %v1197
        %v1199 = vpop.f32.mrb[0].mxu0
        %1200 = vmatprep.mubr.f32.mxu0 0.0
        %1201 = vmatmul.mubr.f32.gmra.mrb[0].mxu0 %v1081
        %v1202 = vpop.f32.mrb[0].mxu0
        %v1203 = vadd.f32 %v1009, %v1202
        %v1204 = vpop.f32.mrb[0].mxu0
        %1205 = vmatprep.mubr.f32.mxu0 0.0
        %1206 = vmatmul.mubr.f32.gmra.mrb[0].mxu0 %v1084
        %v1207 = vpop.f32.mrb[0].mxu0
        %v1208 = vadd.f32 %v1014, %v1207
        %v1209 = vpop.f32.mrb[0].mxu0
        %1210 = vmatprep.mubr.f32.mxu0 0.0
        %1211 = vmatmul.mubr.f32.gmra.mrb[0].mxu0 %v1087
        %v1212 = vpop.f32.mrb[0].mxu0
        %v1213 = vadd.f32 %v1019, %v1212
        %v1214 = vpop.f32.mrb[0].mxu0
        %1215 = vmatprep.mubr.f32.mxu0 0.0
        %1216 = vmatmul.mubr.f32.gmra.mrb[0].mxu0 %v1090
        %v1217 = vpop.f32.mrb[0].mxu0
        %v1218 = vadd.f32 %v1024, %v1217
        %v1219 = vpop.f32.mrb[0].mxu0
        %1220 = vmatprep.mubr.f32.mxu0 0.0
        %1221 = vmatmul.mubr.f32.gmra.mrb[0].mxu0 %v1093
        %v1222 = vpop.f32.mrb[0].mxu0
        %v1223 = vadd.f32 %v1029, %v1222
        %v1224 = vpop.f32.mrb[0].mxu0
        %1225 = vmatprep.mubr.f32.mxu0 0.0
        %1226 = vmatmul.mubr.f32.gmra.mrb[0].mxu0 %v1096
        %v1227 = vpop.f32.mrb[0].mxu0
        %v1228 = vadd.f32 %v1034, %v1227
        %v1229 = vpop.f32.mrb[0].mxu0
        %1230 = vmatprep.mubr.f32.mxu0 0.0
        %1231 = vmatmul.mubr.f32.gmra.mrb[0].mxu0 %v1099
        %v1232 = vpop.f32.mrb[0].mxu0
        %v1233 = vadd.f32 %v1039, %v1232
        %v1234 = vpop.f32.mrb[0].mxu0
        %1235 = vmatprep.mubr.f32.mxu0 0.0
        %1236 = vmatmul.mubr.f32.gmra.mrb[0].mxu0 %v1102
        %v1237 = vpop.f32.mrb[0].mxu0
        %v1238 = vadd.f32 %v1044, %v1237
        %v1239 = vpop.f32.mrb[0].mxu0
        %1240 = vmatprep.mubr.f32.mxu0 0.0
        %1241 = vmatmul.mubr.f32.gmra.mrb[0].mxu0 %v1105
        %v1242 = vpop.f32.mrb[0].mxu0
        %v1243 = vadd.f32 %v1049, %v1242
        %v1244 = vpop.f32.mrb[0].mxu0
        %1245 = vmatprep.mubr.f32.mxu0 0.0
        %1246 = vmatmul.mubr.f32.gmra.mrb[0].mxu0 %v1108
        %v1247 = vpop.f32.mrb[0].mxu0
        %v1248 = vadd.f32 %v1054, %v1247
        %v1249 = vpop.f32.mrb[0].mxu0
        %1250 = vmatprep.mubr.f32.mxu0 0.0
        %1251 = vmatmul.mubr.f32.gmra.mrb[0].mxu0 %v1111
        %v1252 = vpop.f32.mrb[0].mxu0
        %v1253 = vadd.f32 %v1059, %v1252
        %v1254 = vpop.f32.mrb[0].mxu0
        %1255 = vmatprep.mubr.f32.mxu0 0.0
        %1256 = vmatmul.mubr.f32.gmra.mrb[0].mxu0 %v1114
        %v1257 = vpop.f32.mrb[0].mxu0
        %v1258 = vadd.f32 %v1064, %v1257
        %v1259 = vpop.f32.mrb[0].mxu0
        %1260 = vdwg.mxu0
        %v1261 = vlaneseq
        %v1262 = vshrl.u32 %v1261, 7
        %v1263 = vsub.s32 2, %v1262
        %v1264 = vrot.slane %v331, %v1263
        %v1265 = vadd.f32 %v1183, %v1264
        %v1266 = vadd.f32 %v1188, %v1264
        %v1267 = vadd.f32 %v1193, %v1264
        %v1268 = vadd.f32 %v1198, %v1264
        %v1269 = vadd.f32 %v1203, %v1264
        %v1270 = vadd.f32 %v1208, %v1264
        %v1271 = vadd.f32 %v1213, %v1264
        %v1272 = vadd.f32 %v1218, %v1264
        %v1273 = vadd.f32 %v1223, %v1264
        %v1274 = vadd.f32 %v1228, %v1264
        %v1275 = vadd.f32 %v1233, %v1264
        %v1276 = vadd.f32 %v1238, %v1264
        %v1277 = vadd.f32 %v1243, %v1264
        %v1278 = vadd.f32 %v1248, %v1264
        %v1279 = vadd.f32 %v1253, %v1264
        %v1280 = vadd.f32 %v1258, %v1264
        %v1281 = vmax.f32 %v1265, 0.0
        %v1282 = vmax.f32 %v1266, 0.0
        %v1283 = vmax.f32 %v1267, 0.0
        %v1284 = vmax.f32 %v1268, 0.0
        %v1285 = vmax.f32 %v1269, 0.0
        %v1286 = vmax.f32 %v1270, 0.0
        %v1287 = vmax.f32 %v1271, 0.0
        %v1288 = vmax.f32 %v1272, 0.0
        %v1289 = vmax.f32 %v1273, 0.0
        %v1290 = vmax.f32 %v1274, 0.0
        %v1291 = vmax.f32 %v1275, 0.0
        %v1292 = vmax.f32 %v1276, 0.0
        %v1293 = vmax.f32 %v1277, 0.0
        %v1294 = vmax.f32 %v1278, 0.0
        %v1295 = vmax.f32 %v1279, 0.0
        %v1296 = vmax.f32 %v1280, 0.0
        %v1297 = vld [vmem:[%s5] sm:$0xff]
        %v1298 = vld [vmem:[%s5 + $0x8] sm:$0xff]
        %v1299 = vld [vmem:[%s5 + $0x10] sm:$0xff]
        %v1300 = vld [vmem:[%s5 + $0x18] sm:$0xff]
        %v1301 = vld [vmem:[%s5 + $0x20] sm:$0xff]
        %v1302 = vld [vmem:[%s5 + $0x28] sm:$0xff]
        %v1303 = vld [vmem:[%s5 + $0x30] sm:$0xff]
        %v1304 = vld [vmem:[%s5 + $0x38] sm:$0xff]
        %v1305 = vld [vmem:[%s5 + $0x40] sm:$0xff]
        %v1306 = vld [vmem:[%s5 + $0x48] sm:$0xff]
        %v1307 = vld [vmem:[%s5 + $0x50] sm:$0xff]
        %v1308 = vld [vmem:[%s5 + $0x58] sm:$0xff]
        %v1309 = vld [vmem:[%s5 + $0x60] sm:$0xff]
        %v1310 = vld [vmem:[%s5 + $0x68] sm:$0xff]
        %v1311 = vld [vmem:[%s5 + $0x70] sm:$0xff]
        %v1312 = vld [vmem:[%s5 + $0x78] sm:$0xff]
        %v1313 = vlaneseq
        %v1314 = vshrl.u32 %v1313, 7
        %v1315 = vsub.s32 3, %v1314
        %v1316 = vrot.slane %v331, %v1315
        %1317 = vmatprep.subr.mxu0 0.0
        %1318 = vmatpush1.msra.mxu0 %v1297
        %1319 = vmatprep.subr.mxu0 0.0
        %1320 = vmatpush1.msra.mxu0 %v1298
        %1321 = vmatprep.subr.mxu0 0.0
        %1322 = vmatpush1.msra.mxu0 %v1299
        %1323 = vmatprep.subr.mxu0 0.0
        %1324 = vmatpush1.msra.mxu0 %v1300
        %1325 = vmatprep.subr.mxu0 0.0
        %1326 = vmatpush1.msra.mxu0 %v1301
        %1327 = vmatprep.subr.mxu0 0.0
        %1328 = vmatpush1.msra.mxu0 %v1302
        %1329 = vmatprep.subr.mxu0 0.0
        %1330 = vmatpush1.msra.mxu0 %v1303
        %1331 = vmatprep.subr.mxu0 0.0
        %1332 = vmatpush1.msra.mxu0 %v1304
        %1333 = vmatprep.subr.mxu0 0.0
        %1334 = vmatpush1.msra.mxu0 %v1305
        %1335 = vmatprep.subr.mxu0 0.0
        %1336 = vmatpush1.msra.mxu0 %v1306
        %1337 = vmatprep.subr.mxu0 0.0
        %1338 = vmatpush1.msra.mxu0 %v1307
        %1339 = vmatprep.subr.mxu0 0.0
        %1340 = vmatpush1.msra.mxu0 %v1308
        %1341 = vmatprep.subr.mxu0 0.0
        %1342 = vmatpush1.msra.mxu0 %v1309
        %1343 = vmatprep.subr.mxu0 0.0
        %1344 = vmatpush1.msra.mxu0 %v1310
        %1345 = vmatprep.subr.mxu0 0.0
        %1346 = vmatpush1.msra.mxu0 %v1311
        %1347 = vmatprep.subr.mxu0 0.0
        %1348 = vmatpush1.msra.mxu0 %v1312
        %1349 = vmatprep.subr.mxu0 0.0
        %1350 = vmatpush1.msra.mxu0 0.0
        %1351 = vmatprep.subr.mxu0 0.0
        %1352 = vmatpush1.msra.mxu0 0.0
        %1353 = vmatprep.subr.mxu0 0.0
        %1354 = vmatpush1.msra.mxu0 0.0
        %1355 = vmatprep.subr.mxu0 0.0
        %1356 = vmatpush1.msra.mxu0 0.0
        %1357 = vmatprep.subr.mxu0 0.0
        %1358 = vmatpush1.msra.mxu0 0.0
        %1359 = vmatprep.subr.mxu0 0.0
        %1360 = vmatpush1.msra.mxu0 0.0
        %1361 = vmatprep.subr.mxu0 0.0
        %1362 = vmatpush1.msra.mxu0 0.0
        %1363 = vmatprep.subr.mxu0 0.0
        %1364 = vmatpush1.msra.mxu0 0.0
        %1365 = vmatprep.subr.mxu0 0.0
        %1366 = vmatpush1.msra.mxu0 0.0
        %1367 = vmatprep.subr.mxu0 0.0
        %1368 = vmatpush1.msra.mxu0 0.0
        %1369 = vmatprep.subr.mxu0 0.0
        %1370 = vmatpush1.msra.mxu0 0.0
        %1371 = vmatprep.subr.mxu0 0.0
        %1372 = vmatpush1.msra.mxu0 0.0
        %1373 = vmatprep.subr.mxu0 0.0
        %1374 = vmatpush1.msra.mxu0 0.0
        %1375 = vmatprep.subr.mxu0 0.0
        %1376 = vmatpush1.msra.mxu0 0.0
        %1377 = vmatprep.subr.mxu0 0.0
        %1378 = vmatpush1.msra.mxu0 0.0
        %1379 = vmatprep.subr.mxu0 0.0
        %1380 = vmatpush1.msra.mxu0 0.0
        %1381 = vmatprep.mubr.f32.mxu0 0.0
        %1382 = vmatmul.mubr.f32.gmra.mrb[0].mxu0 %v1281
        %v1383 = vpop.f32.mrb[0].mxu0
        %v1384 = vadd.f32 %v1316, %v1383
        %v1385 = vpop.f32.mrb[0].mxu0
        %1386 = vmatprep.mubr.f32.mxu0 0.0
        %1387 = vmatmul.mubr.f32.gmra.mrb[0].mxu0 %v1282
        %v1388 = vpop.f32.mrb[0].mxu0
        %v1389 = vadd.f32 %v1316, %v1388
        %v1390 = vpop.f32.mrb[0].mxu0
        %1391 = vmatprep.mubr.f32.mxu0 0.0
        %1392 = vmatmul.mubr.f32.gmra.mrb[0].mxu0 %v1283
        %v1393 = vpop.f32.mrb[0].mxu0
        %v1394 = vadd.f32 %v1316, %v1393
        %v1395 = vpop.f32.mrb[0].mxu0
        %1396 = vmatprep.mubr.f32.mxu0 0.0
        %1397 = vmatmul.mubr.f32.gmra.mrb[0].mxu0 %v1284
        %v1398 = vpop.f32.mrb[0].mxu0
        %v1399 = vadd.f32 %v1316, %v1398
        %v1400 = vpop.f32.mrb[0].mxu0
        %1401 = vmatprep.mubr.f32.mxu0 0.0
        %1402 = vmatmul.mubr.f32.gmra.mrb[0].mxu0 %v1285
        %v1403 = vpop.f32.mrb[0].mxu0
        %v1404 = vadd.f32 %v1316, %v1403
        %v1405 = vpop.f32.mrb[0].mxu0
        %1406 = vmatprep.mubr.f32.mxu0 0.0
        %1407 = vmatmul.mubr.f32.gmra.mrb[0].mxu0 %v1286
        %v1408 = vpop.f32.mrb[0].mxu0
        %v1409 = vadd.f32 %v1316, %v1408
        %v1410 = vpop.f32.mrb[0].mxu0
        %1411 = vmatprep.mubr.f32.mxu0 0.0
        %1412 = vmatmul.mubr.f32.gmra.mrb[0].mxu0 %v1287
        %v1413 = vpop.f32.mrb[0].mxu0
        %v1414 = vadd.f32 %v1316, %v1413
        %v1415 = vpop.f32.mrb[0].mxu0
        %1416 = vmatprep.mubr.f32.mxu0 0.0
        %1417 = vmatmul.mubr.f32.gmra.mrb[0].mxu0 %v1288
        %v1418 = vpop.f32.mrb[0].mxu0
        %v1419 = vadd.f32 %v1316, %v1418
        %v1420 = vpop.f32.mrb[0].mxu0
        %1421 = vmatprep.mubr.f32.mxu0 0.0
        %1422 = vmatmul.mubr.f32.gmra.mrb[0].mxu0 %v1289
        %v1423 = vpop.f32.mrb[0].mxu0
        %v1424 = vadd.f32 %v1316, %v1423
        %v1425 = vpop.f32.mrb[0].mxu0
        %1426 = vmatprep.mubr.f32.mxu0 0.0
        %1427 = vmatmul.mubr.f32.gmra.mrb[0].mxu0 %v1290
        %v1428 = vpop.f32.mrb[0].mxu0
        %v1429 = vadd.f32 %v1316, %v1428
        %v1430 = vpop.f32.mrb[0].mxu0
        %1431 = vmatprep.mubr.f32.mxu0 0.0
        %1432 = vmatmul.mubr.f32.gmra.mrb[0].mxu0 %v1291
        %v1433 = vpop.f32.mrb[0].mxu0
        %v1434 = vadd.f32 %v1316, %v1433
        %v1435 = vpop.f32.mrb[0].mxu0
        %1436 = vmatprep.mubr.f32.mxu0 0.0
        %1437 = vmatmul.mubr.f32.gmra.mrb[0].mxu0 %v1292
        %v1438 = vpop.f32.mrb[0].mxu0
        %v1439 = vadd.f32 %v1316, %v1438
        %v1440 = vpop.f32.mrb[0].mxu0
        %1441 = vmatprep.mubr.f32.mxu0 0.0
        %1442 = vmatmul.mubr.f32.gmra.mrb[0].mxu0 %v1293
        %v1443 = vpop.f32.mrb[0].mxu0
        %v1444 = vadd.f32 %v1316, %v1443
        %v1445 = vpop.f32.mrb[0].mxu0
        %1446 = vmatprep.mubr.f32.mxu0 0.0
        %1447 = vmatmul.mubr.f32.gmra.mrb[0].mxu0 %v1294
        %v1448 = vpop.f32.mrb[0].mxu0
        %v1449 = vadd.f32 %v1316, %v1448
        %v1450 = vpop.f32.mrb[0].mxu0
        %1451 = vmatprep.mubr.f32.mxu0 0.0
        %1452 = vmatmul.mubr.f32.gmra.mrb[0].mxu0 %v1295
        %v1453 = vpop.f32.mrb[0].mxu0
        %v1454 = vadd.f32 %v1316, %v1453
        %v1455 = vpop.f32.mrb[0].mxu0
        %1456 = vmatprep.mubr.f32.mxu0 0.0
        %1457 = vmatmul.mubr.f32.gmra.mrb[0].mxu0 %v1296
        %v1458 = vpop.f32.mrb[0].mxu0
        %v1459 = vadd.f32 %v1316, %v1458
        %v1460 = vpop.f32.mrb[0].mxu0
        %1461 = vdwg.mxu0
        %v1462 = vxor.u32 %v1384, 2147483648
        %v1463 = vxor.u32 %v1389, 2147483648
        %v1464 = vxor.u32 %v1394, 2147483648
        %v1465 = vxor.u32 %v1399, 2147483648
        %v1466 = vxor.u32 %v1404, 2147483648
        %v1467 = vxor.u32 %v1409, 2147483648
        %v1468 = vxor.u32 %v1414, 2147483648
        %v1469 = vxor.u32 %v1419, 2147483648
        %v1470 = vxor.u32 %v1424, 2147483648
        %v1471 = vxor.u32 %v1429, 2147483648
        %v1472 = vxor.u32 %v1434, 2147483648
        %v1473 = vxor.u32 %v1439, 2147483648
        %v1474 = vxor.u32 %v1444, 2147483648
        %v1475 = vxor.u32 %v1449, 2147483648
        %v1476 = vxor.u32 %v1454, 2147483648
        %v1477 = vxor.u32 %v1459, 2147483648
        %v1478 = vmul.f32 %v1462, 1.442695
        %v1479 = vpow.pop %v1478
        %v1480 = vmul.f32 %v1463, 1.442695
        %v1481 = vpow.pop %v1480
        %v1482 = vmul.f32 %v1464, 1.442695
        %v1483 = vpow.pop %v1482
        %v1484 = vmul.f32 %v1465, 1.442695
        %v1485 = vpow.pop %v1484
        %v1486 = vmul.f32 %v1466, 1.442695
        %v1487 = vpow.pop %v1486
        %v1488 = vmul.f32 %v1467, 1.442695
        %v1489 = vpow.pop %v1488
        %v1490 = vmul.f32 %v1468, 1.442695
        %v1491 = vpow.pop %v1490
        %v1492 = vmul.f32 %v1469, 1.442695
        %v1493 = vpow.pop %v1492
        %v1494 = vmul.f32 %v1470, 1.442695
        %v1495 = vpow.pop %v1494
        %v1496 = vmul.f32 %v1471, 1.442695
        %v1497 = vpow.pop %v1496
        %v1498 = vmul.f32 %v1472, 1.442695
        %v1499 = vpow.pop %v1498
        %v1500 = vmul.f32 %v1473, 1.442695
        %v1501 = vpow.pop %v1500
        %v1502 = vmul.f32 %v1474, 1.442695
        %v1503 = vpow.pop %v1502
        %v1504 = vmul.f32 %v1475, 1.442695
        %v1505 = vpow.pop %v1504
        %v1506 = vmul.f32 %v1476, 1.442695
        %v1507 = vpow.pop %v1506
        %v1508 = vmul.f32 %v1477, 1.442695
        %v1509 = vpow.pop %v1508
        %v1510 = vadd.f32 %v1479, 1.0
        %v1511 = vadd.f32 %v1481, 1.0
        %v1512 = vadd.f32 %v1483, 1.0
        %v1513 = vadd.f32 %v1485, 1.0
        %v1514 = vadd.f32 %v1487, 1.0
        %v1515 = vadd.f32 %v1489, 1.0
        %v1516 = vadd.f32 %v1491, 1.0
        %v1517 = vadd.f32 %v1493, 1.0
        %v1518 = vadd.f32 %v1495, 1.0
        %v1519 = vadd.f32 %v1497, 1.0
        %v1520 = vadd.f32 %v1499, 1.0
        %v1521 = vadd.f32 %v1501, 1.0
        %v1522 = vadd.f32 %v1503, 1.0
        %v1523 = vadd.f32 %v1505, 1.0
        %v1524 = vadd.f32 %v1507, 1.0
        %v1525 = vadd.f32 %v1509, 1.0
        %v1526 = vrcp.pop %v1510
        %v1527 = vmul.f32 1.0, %v1526
        %v1528 = vrcp.pop %v1511
        %v1529 = vmul.f32 1.0, %v1528
        %v1530 = vrcp.pop %v1512
        %v1531 = vmul.f32 1.0, %v1530
        %v1532 = vrcp.pop %v1513
        %v1533 = vmul.f32 1.0, %v1532
        %v1534 = vrcp.pop %v1514
        %v1535 = vmul.f32 1.0, %v1534
        %v1536 = vrcp.pop %v1515
        %v1537 = vmul.f32 1.0, %v1536
        %v1538 = vrcp.pop %v1516
        %v1539 = vmul.f32 1.0, %v1538
        %v1540 = vrcp.pop %v1517
        %v1541 = vmul.f32 1.0, %v1540
        %v1542 = vrcp.pop %v1518
        %v1543 = vmul.f32 1.0, %v1542
        %v1544 = vrcp.pop %v1519
        %v1545 = vmul.f32 1.0, %v1544
        %v1546 = vrcp.pop %v1520
        %v1547 = vmul.f32 1.0, %v1546
        %v1548 = vrcp.pop %v1521
        %v1549 = vmul.f32 1.0, %v1548
        %v1550 = vrcp.pop %v1522
        %v1551 = vmul.f32 1.0, %v1550
        %v1552 = vrcp.pop %v1523
        %v1553 = vmul.f32 1.0, %v1552
        %v1554 = vrcp.pop %v1524
        %v1555 = vmul.f32 1.0, %v1554
        %v1556 = vrcp.pop %v1525
        %v1557 = vmul.f32 1.0, %v1556
        %1558 = vst [vmem:[%s274] sm:$0xff] %v1527
        %1559 = vst [vmem:[%s274 + $0x8] sm:$0xff] %v1529
        %1560 = vst [vmem:[%s274 + $0x10] sm:$0xff] %v1531
        %1561 = vst [vmem:[%s274 + $0x18] sm:$0xff] %v1533
        %1562 = vst [vmem:[%s274 + $0x20] sm:$0xff] %v1535
        %1563 = vst [vmem:[%s274 + $0x28] sm:$0xff] %v1537
        %1564 = vst [vmem:[%s274 + $0x30] sm:$0xff] %v1539
        %1565 = vst [vmem:[%s274 + $0x38] sm:$0xff] %v1541
        %1566 = vst [vmem:[%s274 + $0x40] sm:$0xff] %v1543
        %1567 = vst [vmem:[%s274 + $0x48] sm:$0xff] %v1545
        %1568 = vst [vmem:[%s274 + $0x50] sm:$0xff] %v1547
        %1569 = vst [vmem:[%s274 + $0x58] sm:$0xff] %v1549
        %1570 = vst [vmem:[%s274 + $0x60] sm:$0xff] %v1551
        %1571 = vst [vmem:[%s274 + $0x68] sm:$0xff] %v1553
        %1572 = vst [vmem:[%s274 + $0x70] sm:$0xff] %v1555
        %1573 = vst [vmem:[%s274 + $0x78] sm:$0xff] %v1557
        %s1574 = sand.u32 %s181, 1
        %s1575 = scalar_lea.sflag [#allocation3], %s1574
        %s1576 = sand.u32 %s181, 1
        %s1577 = smul.addr %s1576, 128
        %s1578 = scalar_lea.vmem [#allocation2], %s1577
        // Predicated region
        $region49: #{tpu_custom_call.1} parent=47 // pred_check
          %p1579 = pneg %p191
        $region50: #{tpu_custom_call.1} parent=47 // pred_check_branch
          %1581 = sbr.rel (%p1579) target = $region52
        $region51: #{tpu_custom_call.1} parent=47 // pred_region
          %s1582 = smul.u32 16, %s21
          %s1584 = ssub.s32 2048, 2048
          %1585 = vsyncadd %s1575, %s1584
          %s1586 = smul.addr %s1582, 128
          %s1587 = scalar_lea.hbm %s7, %s1586
          %s1588 = sshll.u32 %s1578, 4
          %s1589 = int_to_ptr.vmem [resolvable:$true] %s1588
          %1594 = dma.vmem_to_hbm [thread:$0]  %s1589, 2048, %s1587, %s1575, 128, 128, 8
        $region52: #{tpu_custom_call.1} parent=47 // pred_fallthru
          _
      $region48: #{tpu_custom_call.1} parent=5 // pred_fallthru
        _
      %p1595 = scmp.le.s32.totalorder 2, %s16
      // Predicated region
      $region53: #{tpu_custom_call.1} parent=5 // pred_check
        %p1596 = pneg %p1595
      $region54: #{tpu_custom_call.1} parent=5 // pred_check_branch
        %1598 = sbr.rel (%p1596) target = $region56
      $region55: #{tpu_custom_call.1} parent=5 // pred_region
        %s1599 = ssub.s32 %s16, 2
        // Predicated region
        $region57: #{tpu_custom_call.1} parent=55 // pred_check
          %p1600 = pneg %p197
        $region58: #{tpu_custom_call.1} parent=55 // pred_check_branch
          %1602 = sbr.rel (%p1600) target = $region60
        $region59: #{tpu_custom_call.1} parent=55 // pred_region
          %s1603 = sand.u32 %s182, 1
          %s1604 = scalar_lea.sflag [#allocation3], %s1603
          %s1605 = sand.u32 %s182, 1
          %s1606 = smul.addr %s1605, 128
          %s1607 = scalar_lea.vmem [#allocation2], %s1606
          %1608 = dma.done %s1604, 2048
        $region60: #{tpu_custom_call.1} parent=55 // pred_fallthru
          _
      $region56: #{tpu_custom_call.1} parent=5 // pred_fallthru
        _
    $region6: #{tpu_custom_call.1} parent=1 // loop_footer
      %s20 = sadd.s32 1, %s16
    $region7: #{tpu_custom_call.1} parent=1 // loop_footer_branch
      %15 = sbr.rel target = $region3
    $region8: #{tpu_custom_call.1} parent=1 // loop_exit
      _
    %1609 = vsyncpa [#allocation3], 1
    %s1610 = scalar_lea.sflag [#allocation3], 1
    %1611 = vsyncpa %s1610, 1

</llo_original>
